<compile_context>
chip_gen: v7x
topology: tpu7x:2x2x1
jax: 0.10.0
libtpu: 0.0.40
codegen_flags: <defaults>
</compile_context>

<pallas_src>
import functools

import jax
import jax.numpy as jnp
from jax.experimental import pallas as pl
from jax.experimental.pallas import tpu as pltpu


def _encoder_kernel(*refs, n_layers):
    """Fused multi-layer LSTM encoder.

    refs layout (num_scalar_prefetch=0):
      refs[0]                      : x        (T, Bp, D)   padded, time-major input
      refs[1+3l : 4+3l]            : layer l  W_ih^T (Din,4H), W_hh^T (H,4H), bias (1,4H)
      refs[1+3n], refs[2+3n]       : h_out, c_out  (n_layers, Bp, H)
      refs[3+3n]                   : act_sc   (T*Bp, H)    inter-layer activations (VMEM)
      refs[4+3n]                   : gates_sc (T*Bp, 4H)   hoisted input projection (VMEM)
    """
    x_ref = refs[0]
    h_out_ref = refs[1 + 3 * n_layers]
    c_out_ref = refs[2 + 3 * n_layers]
    act_sc = refs[3 + 3 * n_layers]
    gates_sc = refs[4 + 3 * n_layers]

    T, Bp, D = x_ref.shape
    H = refs[2].shape[0]          # W_hh^T of layer 0 is (H, 4H)
    G = 4 * H

    # Lane mask selecting the "g" gate columns [2H, 3H) (tanh), others sigmoid.
    col = jax.lax.broadcasted_iota(jnp.int32, (Bp, G), 1)
    tanh_mask = jnp.logical_and(col >= 2 * H, col < 3 * H)

    for layer in range(n_layers):
        wih_ref = refs[1 + 3 * layer]   # (Din, 4H)
        whh_ref = refs[2 + 3 * layer]   # (H, 4H)
        b_ref = refs[3 + 3 * layer]     # (1, 4H)

        if layer == 0:
            xin = x_ref[...].reshape(T * Bp, D)       # (T*Bp, D)
        else:
            xin = act_sc[...]                         # (T*Bp, H)

        # Hoisted, time-independent input projection for ALL timesteps at once.
        gates_sc[...] = (
            jnp.dot(xin, wih_ref[...], preferred_element_type=jnp.float32)
            + b_ref[...]
        )

        whh = whh_ref[...]                            # resident in vregs for the loop

        def step(t, carry, whh=whh):
            h, c = carry
            row = t * Bp
            g = gates_sc[pl.ds(row, Bp), :] + jnp.dot(
                h, whh, preferred_element_type=jnp.float32)          # (Bp, 4H)
            # Two full-vreg EUP passes + per-lane select instead of 4 sub-vreg passes.
            sig = jax.nn.sigmoid(g)
            th = jnp.tanh(g)
            act = jnp.where(tanh_mask, th, sig)
            i_g = act[:, 0:H]
            f_g = act[:, H:2 * H]
            g_g = act[:, 2 * H:3 * H]
            o_g = act[:, 3 * H:4 * H]
            c_new = f_g * c + i_g * g_g
            h_new = o_g * jnp.tanh(c_new)
            act_sc[pl.ds(row, Bp), :] = h_new          # feeds the next layer (VMEM only)
            return h_new, c_new

        zeros = jnp.zeros((Bp, H), jnp.float32)
        h_f, c_f = jax.lax.fori_loop(0, T, step, (zeros, zeros), unroll=True)

        h_out_ref[layer] = h_f
        c_out_ref[layer] = c_f


def _round_up(n, m):
    return ((n + m - 1) // m) * m


@functools.partial(jax.jit, static_argnames=("n_layers",))
def encoder_forward(src, params, n_layers):
    """Encoder.forward: src (B, T, D) -> (hidden, cell), each (n_layers, B, H)."""
    B, T, D = src.shape
    H = params[0][1].shape[0]
    Bp = _round_up(max(B, 8), 8)                      # pad batch to sublane granularity

    x = jnp.transpose(src, (1, 0, 2)).astype(jnp.float32)   # (T, B, D) time-major
    if Bp != B:
        x = jnp.pad(x, ((0, 0), (0, Bp - B), (0, 0)))

    flat = []
    in_specs = [pl.BlockSpec((T, Bp, D), lambda i: (0, 0, 0))]
    for layer in range(n_layers):
        w_ih_t, w_hh_t, bias = params[layer]
        d_in = w_ih_t.shape[0]
        flat += [w_ih_t, w_hh_t, bias]
        in_specs += [
            pl.BlockSpec((d_in, 4 * H), lambda i: (0, 0)),
            pl.BlockSpec((H, 4 * H), lambda i: (0, 0)),
            pl.BlockSpec((1, 4 * H), lambda i: (0, 0)),
        ]

    grid_spec = pltpu.PrefetchScalarGridSpec(
        num_scalar_prefetch=0,
        grid=(1,),                                     # whole problem in one kernel step
        in_specs=in_specs,
        out_specs=[
            pl.BlockSpec((n_layers, Bp, H), lambda i: (0, 0, 0)),
            pl.BlockSpec((n_layers, Bp, H), lambda i: (0, 0, 0)),
        ],
        scratch_shapes=[
            pltpu.VMEM((T * Bp, H), jnp.float32),      # inter-layer activations
            pltpu.VMEM((T * Bp, 4 * H), jnp.float32),  # hoisted input-projection gates
        ],
    )

    h_all, c_all = pl.pallas_call(
        functools.partial(_encoder_kernel, n_layers=n_layers),
        grid_spec=grid_spec,
        out_shape=(
            jax.ShapeDtypeStruct((n_layers, Bp, H), jnp.float32),
            jax.ShapeDtypeStruct((n_layers, Bp, H), jnp.float32),
        ),
        compiler_params=pltpu.CompilerParams(
            dimension_semantics=("arbitrary",),        # single sequential step
        ),
    )(x, *flat)

    # Strip the batch padding.
    return h_all[:, :B, :], c_all[:, :B, :]


def init_lstm_params(key, input_dim, hid_dim, n_layers):
    """Deterministic PyTorch-style init: U(-1/sqrt(H), 1/sqrt(H))."""
    k = 1.0 / jnp.sqrt(jnp.float32(hid_dim))
    params = []
    for layer in range(n_layers):
        d_in = input_dim if layer == 0 else hid_dim
        key, k1, k2, k3, k4 = jax.random.split(key, 5)
        w_ih = jax.random.uniform(k1, (4 * hid_dim, d_in), jnp.float32, -k, k)
        w_hh = jax.random.uniform(k2, (4 * hid_dim, hid_dim), jnp.float32, -k, k)
        b_ih = jax.random.uniform(k3, (4 * hid_dim,), jnp.float32, -k, k)
        b_hh = jax.random.uniform(k4, (4 * hid_dim,), jnp.float32, -k, k)
        # pre-transpose weights, fuse biases
        params.append((w_ih.T, w_hh.T, (b_ih + b_hh)[None, :]))
    return params


def encoder_reference(src, params, n_layers):
    """Pure-JAX reference (lax.scan LSTM) for verification."""
    x = jnp.transpose(src, (1, 0, 2)).astype(jnp.float32)   # (T, B, D)
    B = x.shape[1]
    hs, cs = [], []
    for layer in range(n_layers):
        w_ih_t, w_hh_t, bias = params[layer]
        H = w_hh_t.shape[0]

        def step(carry, x_t):
            h, c = carry
            gates = x_t @ w_ih_t + h @ w_hh_t + bias
            i = jax.nn.sigmoid(gates[:, 0 * H:1 * H])
            f = jax.nn.sigmoid(gates[:, 1 * H:2 * H])
            g = jnp.tanh(gates[:, 2 * H:3 * H])
            o = jax.nn.sigmoid(gates[:, 3 * H:4 * H])
            c_new = f * c + i * g
            h_new = o * jnp.tanh(c_new)
            return (h_new, c_new), h_new

        init = (jnp.zeros((B, H), jnp.float32), jnp.zeros((B, H), jnp.float32))
        (h_n, c_n), out = jax.lax.scan(step, init, x)
        x = out
        hs.append(h_n)
        cs.append(c_n)
    return jnp.stack(hs, 0), jnp.stack(cs, 0)


if __name__ == "__main__":
    # Small shapes consistent with the module's forward:
    # src: (batch_size, utterance_length, input_dim)
    batch, seq_len, input_dim, hid_dim, n_layers = 2, 8, 16, 32, 2

    key = jax.random.PRNGKey(0)
    key_p, key_x = jax.random.split(key)
    params = init_lstm_params(key_p, input_dim, hid_dim, n_layers)
    src = jax.random.normal(key_x, (batch, seq_len, input_dim), jnp.float32)

    hidden, cell = encoder_forward(src, params, n_layers)
    hidden, cell = jax.block_until_ready((hidden, cell))

    # sanity-check against pure-JAX reference
    h_ref, c_ref = encoder_reference(src, params, n_layers)
    assert hidden.shape == (n_layers, batch, hid_dim)
    assert cell.shape == (n_layers, batch, hid_dim)
    assert jnp.allclose(hidden, h_ref, atol=1e-4, rtol=1e-4)
    assert jnp.allclose(cell, c_ref, atol=1e-4, rtol=1e-4)

    print("KERNEL_OK")
</pallas_src>

<mosaic_0001>
module attributes {stable_mosaic.version = 11 : i64} {
  func.func @_encoder_kernel(%arg0: i32, %arg1: memref<8x8x16xf32, #tpu.memory_space<vmem>>, %arg2: memref<16x128xf32, #tpu.memory_space<vmem>>, %arg3: memref<32x128xf32, #tpu.memory_space<vmem>>, %arg4: memref<1x128xf32, #tpu.memory_space<vmem>>, %arg5: memref<32x128xf32, #tpu.memory_space<vmem>>, %arg6: memref<32x128xf32, #tpu.memory_space<vmem>>, %arg7: memref<1x128xf32, #tpu.memory_space<vmem>>, %arg8: memref<2x8x32xf32, #tpu.memory_space<vmem>>, %arg9: memref<2x8x32xf32, #tpu.memory_space<vmem>>, %arg10: memref<64x32xf32, #tpu.memory_space<vmem>>, %arg11: memref<64x128xf32, #tpu.memory_space<vmem>>) attributes {dimension_semantics = [#tpu.dimension_semantics<arbitrary>], iteration_bounds = array<i64: 1>, scalar_prefetch = 0 : i64, scratch_operands = 2 : i64, tpu.core_type = #tpu.core_type<tc>, window_params = [{pipeline_mode = #tpu.pipeline_mode<synchronous>, transform_indices = @transform_0, window_bounds = array<i64: 8, 8, 16>}, {pipeline_mode = #tpu.pipeline_mode<synchronous>, transform_indices = @transform_1, window_bounds = array<i64: 16, 128>}, {pipeline_mode = #tpu.pipeline_mode<synchronous>, transform_indices = @transform_2, window_bounds = array<i64: 32, 128>}, {pipeline_mode = #tpu.pipeline_mode<synchronous>, transform_indices = @transform_3, window_bounds = array<i64: 1, 128>}, {pipeline_mode = #tpu.pipeline_mode<synchronous>, transform_indices = @transform_4, window_bounds = array<i64: 32, 128>}, {pipeline_mode = #tpu.pipeline_mode<synchronous>, transform_indices = @transform_5, window_bounds = array<i64: 32, 128>}, {pipeline_mode = #tpu.pipeline_mode<synchronous>, transform_indices = @transform_6, window_bounds = array<i64: 1, 128>}, {pipeline_mode = #tpu.pipeline_mode<synchronous>, transform_indices = @transform_7, window_bounds = array<i64: 2, 8, 32>}, {pipeline_mode = #tpu.pipeline_mode<synchronous>, transform_indices = @transform_8, window_bounds = array<i64: 2, 8, 32>}]} {
    %0 = tpu.iota {dimensions = array<i32: 1>} : vector<8x128xi32>
    %c64_i32 = arith.constant 64 : i32
    %1 = vector.broadcast %c64_i32 : i32 to vector<8x128xi32>
    %2 = arith.cmpi sge, %0, %1 : vector<8x128xi32>
    %c96_i32 = arith.constant 96 : i32
    %3 = vector.broadcast %c96_i32 : i32 to vector<8x128xi32>
    %4 = arith.cmpi slt, %0, %3 : vector<8x128xi32>
    %5 = arith.andi %2, %4 : vector<8x128xi1>
    %c0 = arith.constant 0 : index
    %c0_0 = arith.constant 0 : index
    %c0_1 = arith.constant 0 : index
    %6 = vector.load %arg1[%c0, %c0_0, %c0_1] : memref<8x8x16xf32, #tpu.memory_space<vmem>>, vector<8x8x16xf32>
    %7 = vector.shape_cast %6 : vector<8x8x16xf32> to vector<64x16xf32>
    %c0_2 = arith.constant 0 : index
    %c0_3 = arith.constant 0 : index
    %8 = vector.load %arg2[%c0_2, %c0_3] : memref<16x128xf32, #tpu.memory_space<vmem>>, vector<16x128xf32>
    %cst = arith.constant dense<0.000000e+00> : vector<64x128xf32>
    %9 = tpu.matmul %7, %8, %cst {dimension_numbers = #tpu.dot_dimension_numbers<[1], [0], [0], [1], [0, 0, 1, 1], [], []>} : vector<64x16xf32>, vector<16x128xf32>, vector<64x128xf32> -> vector<64x128xf32>
    %c0_4 = arith.constant 0 : index
    %c0_5 = arith.constant 0 : index
    %10 = vector.load %arg4[%c0_4, %c0_5] : memref<1x128xf32, #tpu.memory_space<vmem>>, vector<1x128xf32>
    %11 = vector.broadcast %10 : vector<1x128xf32> to vector<64x128xf32>
    %12 = arith.addf %9, %11 : vector<64x128xf32>
    %c0_6 = arith.constant 0 : index
    %c0_7 = arith.constant 0 : index
    %13 = vector.load %arg11[%c0_6, %c0_7] : memref<64x128xf32, #tpu.memory_space<vmem>>, vector<64x128xf32>
    tpu.vector_store %arg11[%c0_6, %c0_7], %12 {strides = array<i32>} : memref<64x128xf32, #tpu.memory_space<vmem>>, vector<64x128xf32>,
    %c0_8 = arith.constant 0 : index
    %c0_9 = arith.constant 0 : index
    %14 = vector.load %arg3[%c0_8, %c0_9] : memref<32x128xf32, #tpu.memory_space<vmem>>, vector<32x128xf32>
    %cst_10 = arith.constant 0.000000e+00 : f32
    %15 = vector.broadcast %cst_10 : f32 to vector<8x32xf32>
    %c0_i32 = arith.constant 0 : i32
    %c8_i32 = arith.constant 8 : i32
    %16 = arith.muli %c0_i32, %c8_i32 : i32
    %17 = arith.index_cast %16 : i32 to index
    %c0_11 = arith.constant 0 : index
    %18 = vector.load %arg11[%17, %c0_11] : memref<64x128xf32, #tpu.memory_space<vmem>>, vector<8x128xf32>
    %cst_12 = arith.constant dense<0.000000e+00> : vector<8x128xf32>
    %19 = tpu.matmul %15, %14, %cst_12 {dimension_numbers = #tpu.dot_dimension_numbers<[1], [0], [0], [1], [0, 0, 1, 1], [], []>} : vector<8x32xf32>, vector<32x128xf32>, vector<8x128xf32> -> vector<8x128xf32>
    %20 = arith.addf %18, %19 : vector<8x128xf32>
    %21 = arith.negf %20 : vector<8x128xf32>
    %22 = math.exp %21 : vector<8x128xf32>
    %cst_13 = arith.constant 1.000000e+00 : f32
    %23 = vector.broadcast %cst_13 : f32 to vector<8x128xf32>
    %24 = arith.addf %23, %22 : vector<8x128xf32>
    %25 = arith.divf %23, %24 : vector<8x128xf32>
    %26 = math.tanh %20 : vector<8x128xf32>
    %27 = arith.select %5, %26, %25 : vector<8x128xi1>, vector<8x128xf32>
    %28 = vector.extract_strided_slice %27 {offsets = [0, 0], sizes = [8, 32], strides = [1, 1]} : vector<8x128xf32> to vector<8x32xf32>
    %29 = vector.extract_strided_slice %27 {offsets = [0, 32], sizes = [8, 32], strides = [1, 1]} : vector<8x128xf32> to vector<8x32xf32>
    %30 = vector.extract_strided_slice %27 {offsets = [0, 64], sizes = [8, 32], strides = [1, 1]} : vector<8x128xf32> to vector<8x32xf32>
    %31 = vector.extract_strided_slice %27 {offsets = [0, 96], sizes = [8, 32], strides = [1, 1]} : vector<8x128xf32> to vector<8x32xf32>
    %32 = arith.mulf %29, %15 : vector<8x32xf32>
    %33 = arith.mulf %28, %30 : vector<8x32xf32>
    %34 = arith.addf %32, %33 : vector<8x32xf32>
    %35 = math.tanh %34 : vector<8x32xf32>
    %36 = arith.mulf %31, %35 : vector<8x32xf32>
    %37 = arith.index_cast %16 : i32 to index
    %c0_14 = arith.constant 0 : index
    %38 = vector.load %arg10[%37, %c0_14] : memref<64x32xf32, #tpu.memory_space<vmem>>, vector<8x32xf32>
    tpu.vector_store %arg10[%37, %c0_14], %36 {strides = array<i32>} : memref<64x32xf32, #tpu.memory_space<vmem>>, vector<8x32xf32>,
    %c1_i32 = arith.constant 1 : i32
    %c8_i32_15 = arith.constant 8 : i32
    %39 = arith.muli %c1_i32, %c8_i32_15 : i32
    %40 = arith.index_cast %39 : i32 to index
    %c0_16 = arith.constant 0 : index
    %41 = vector.load %arg11[%40, %c0_16] : memref<64x128xf32, #tpu.memory_space<vmem>>, vector<8x128xf32>
    %cst_17 = arith.constant dense<0.000000e+00> : vector<8x128xf32>
    %42 = tpu.matmul %36, %14, %cst_17 {dimension_numbers = #tpu.dot_dimension_numbers<[1], [0], [0], [1], [0, 0, 1, 1], [], []>} : vector<8x32xf32>, vector<32x128xf32>, vector<8x128xf32> -> vector<8x128xf32>
    %43 = arith.addf %41, %42 : vector<8x128xf32>
    %44 = arith.negf %43 : vector<8x128xf32>
    %45 = math.exp %44 : vector<8x128xf32>
    %cst_18 = arith.constant 1.000000e+00 : f32
    %46 = vector.broadcast %cst_18 : f32 to vector<8x128xf32>
    %47 = arith.addf %46, %45 : vector<8x128xf32>
    %48 = arith.divf %46, %47 : vector<8x128xf32>
    %49 = math.tanh %43 : vector<8x128xf32>
    %50 = arith.select %5, %49, %48 : vector<8x128xi1>, vector<8x128xf32>
    %51 = vector.extract_strided_slice %50 {offsets = [0, 0], sizes = [8, 32], strides = [1, 1]} : vector<8x128xf32> to vector<8x32xf32>
    %52 = vector.extract_strided_slice %50 {offsets = [0, 32], sizes = [8, 32], strides = [1, 1]} : vector<8x128xf32> to vector<8x32xf32>
    %53 = vector.extract_strided_slice %50 {offsets = [0, 64], sizes = [8, 32], strides = [1, 1]} : vector<8x128xf32> to vector<8x32xf32>
    %54 = vector.extract_strided_slice %50 {offsets = [0, 96], sizes = [8, 32], strides = [1, 1]} : vector<8x128xf32> to vector<8x32xf32>
    %55 = arith.mulf %52, %34 : vector<8x32xf32>
    %56 = arith.mulf %51, %53 : vector<8x32xf32>
    %57 = arith.addf %55, %56 : vector<8x32xf32>
    %58 = math.tanh %57 : vector<8x32xf32>
    %59 = arith.mulf %54, %58 : vector<8x32xf32>
    %60 = arith.index_cast %39 : i32 to index
    %c0_19 = arith.constant 0 : index
    %61 = vector.load %arg10[%60, %c0_19] : memref<64x32xf32, #tpu.memory_space<vmem>>, vector<8x32xf32>
    tpu.vector_store %arg10[%60, %c0_19], %59 {strides = array<i32>} : memref<64x32xf32, #tpu.memory_space<vmem>>, vector<8x32xf32>,
    %c2_i32 = arith.constant 2 : i32
    %c8_i32_20 = arith.constant 8 : i32
    %62 = arith.muli %c2_i32, %c8_i32_20 : i32
    %63 = arith.index_cast %62 : i32 to index
    %c0_21 = arith.constant 0 : index
    %64 = vector.load %arg11[%63, %c0_21] : memref<64x128xf32, #tpu.memory_space<vmem>>, vector<8x128xf32>
    %cst_22 = arith.constant dense<0.000000e+00> : vector<8x128xf32>
    %65 = tpu.matmul %59, %14, %cst_22 {dimension_numbers = #tpu.dot_dimension_numbers<[1], [0], [0], [1], [0, 0, 1, 1], [], []>} : vector<8x32xf32>, vector<32x128xf32>, vector<8x128xf32> -> vector<8x128xf32>
    %66 = arith.addf %64, %65 : vector<8x128xf32>
    %67 = arith.negf %66 : vector<8x128xf32>
    %68 = math.exp %67 : vector<8x128xf32>
    %cst_23 = arith.constant 1.000000e+00 : f32
    %69 = vector.broadcast %cst_23 : f32 to vector<8x128xf32>
    %70 = arith.addf %69, %68 : vector<8x128xf32>
    %71 = arith.divf %69, %70 : vector<8x128xf32>
    %72 = math.tanh %66 : vector<8x128xf32>
    %73 = arith.select %5, %72, %71 : vector<8x128xi1>, vector<8x128xf32>
    %74 = vector.extract_strided_slice %73 {offsets = [0, 0], sizes = [8, 32], strides = [1, 1]} : vector<8x128xf32> to vector<8x32xf32>
    %75 = vector.extract_strided_slice %73 {offsets = [0, 32], sizes = [8, 32], strides = [1, 1]} : vector<8x128xf32> to vector<8x32xf32>
    %76 = vector.extract_strided_slice %73 {offsets = [0, 64], sizes = [8, 32], strides = [1, 1]} : vector<8x128xf32> to vector<8x32xf32>
    %77 = vector.extract_strided_slice %73 {offsets = [0, 96], sizes = [8, 32], strides = [1, 1]} : vector<8x128xf32> to vector<8x32xf32>
    %78 = arith.mulf %75, %57 : vector<8x32xf32>
    %79 = arith.mulf %74, %76 : vector<8x32xf32>
    %80 = arith.addf %78, %79 : vector<8x32xf32>
    %81 = math.tanh %80 : vector<8x32xf32>
    %82 = arith.mulf %77, %81 : vector<8x32xf32>
    %83 = arith.index_cast %62 : i32 to index
    %c0_24 = arith.constant 0 : index
    %84 = vector.load %arg10[%83, %c0_24] : memref<64x32xf32, #tpu.memory_space<vmem>>, vector<8x32xf32>
    tpu.vector_store %arg10[%83, %c0_24], %82 {strides = array<i32>} : memref<64x32xf32, #tpu.memory_space<vmem>>, vector<8x32xf32>,
    %c3_i32 = arith.constant 3 : i32
    %c8_i32_25 = arith.constant 8 : i32
    %85 = arith.muli %c3_i32, %c8_i32_25 : i32
    %86 = arith.index_cast %85 : i32 to index
    %c0_26 = arith.constant 0 : index
    %87 = vector.load %arg11[%86, %c0_26] : memref<64x128xf32, #tpu.memory_space<vmem>>, vector<8x128xf32>
    %cst_27 = arith.constant dense<0.000000e+00> : vector<8x128xf32>
    %88 = tpu.matmul %82, %14, %cst_27 {dimension_numbers = #tpu.dot_dimension_numbers<[1], [0], [0], [1], [0, 0, 1, 1], [], []>} : vector<8x32xf32>, vector<32x128xf32>, vector<8x128xf32> -> vector<8x128xf32>
    %89 = arith.addf %87, %88 : vector<8x128xf32>
    %90 = arith.negf %89 : vector<8x128xf32>
    %91 = math.exp %90 : vector<8x128xf32>
    %cst_28 = arith.constant 1.000000e+00 : f32
    %92 = vector.broadcast %cst_28 : f32 to vector<8x128xf32>
    %93 = arith.addf %92, %91 : vector<8x128xf32>
    %94 = arith.divf %92, %93 : vector<8x128xf32>
    %95 = math.tanh %89 : vector<8x128xf32>
    %96 = arith.select %5, %95, %94 : vector<8x128xi1>, vector<8x128xf32>
    %97 = vector.extract_strided_slice %96 {offsets = [0, 0], sizes = [8, 32], strides = [1, 1]} : vector<8x128xf32> to vector<8x32xf32>
    %98 = vector.extract_strided_slice %96 {offsets = [0, 32], sizes = [8, 32], strides = [1, 1]} : vector<8x128xf32> to vector<8x32xf32>
    %99 = vector.extract_strided_slice %96 {offsets = [0, 64], sizes = [8, 32], strides = [1, 1]} : vector<8x128xf32> to vector<8x32xf32>
    %100 = vector.extract_strided_slice %96 {offsets = [0, 96], sizes = [8, 32], strides = [1, 1]} : vector<8x128xf32> to vector<8x32xf32>
    %101 = arith.mulf %98, %80 : vector<8x32xf32>
    %102 = arith.mulf %97, %99 : vector<8x32xf32>
    %103 = arith.addf %101, %102 : vector<8x32xf32>
    %104 = math.tanh %103 : vector<8x32xf32>
    %105 = arith.mulf %100, %104 : vector<8x32xf32>
    %106 = arith.index_cast %85 : i32 to index
    %c0_29 = arith.constant 0 : index
    %107 = vector.load %arg10[%106, %c0_29] : memref<64x32xf32, #tpu.memory_space<vmem>>, vector<8x32xf32>
    tpu.vector_store %arg10[%106, %c0_29], %105 {strides = array<i32>} : memref<64x32xf32, #tpu.memory_space<vmem>>, vector<8x32xf32>,
    %c4_i32 = arith.constant 4 : i32
    %c8_i32_30 = arith.constant 8 : i32
    %108 = arith.muli %c4_i32, %c8_i32_30 : i32
    %109 = arith.index_cast %108 : i32 to index
    %c0_31 = arith.constant 0 : index
    %110 = vector.load %arg11[%109, %c0_31] : memref<64x128xf32, #tpu.memory_space<vmem>>, vector<8x128xf32>
    %cst_32 = arith.constant dense<0.000000e+00> : vector<8x128xf32>
    %111 = tpu.matmul %105, %14, %cst_32 {dimension_numbers = #tpu.dot_dimension_numbers<[1], [0], [0], [1], [0, 0, 1, 1], [], []>} : vector<8x32xf32>, vector<32x128xf32>, vector<8x128xf32> -> vector<8x128xf32>
    %112 = arith.addf %110, %111 : vector<8x128xf32>
    %113 = arith.negf %112 : vector<8x128xf32>
    %114 = math.exp %113 : vector<8x128xf32>
    %cst_33 = arith.constant 1.000000e+00 : f32
    %115 = vector.broadcast %cst_33 : f32 to vector<8x128xf32>
    %116 = arith.addf %115, %114 : vector<8x128xf32>
    %117 = arith.divf %115, %116 : vector<8x128xf32>
    %118 = math.tanh %112 : vector<8x128xf32>
    %119 = arith.select %5, %118, %117 : vector<8x128xi1>, vector<8x128xf32>
    %120 = vector.extract_strided_slice %119 {offsets = [0, 0], sizes = [8, 32], strides = [1, 1]} : vector<8x128xf32> to vector<8x32xf32>
    %121 = vector.extract_strided_slice %119 {offsets = [0, 32], sizes = [8, 32], strides = [1, 1]} : vector<8x128xf32> to vector<8x32xf32>
    %122 = vector.extract_strided_slice %119 {offsets = [0, 64], sizes = [8, 32], strides = [1, 1]} : vector<8x128xf32> to vector<8x32xf32>
    %123 = vector.extract_strided_slice %119 {offsets = [0, 96], sizes = [8, 32], strides = [1, 1]} : vector<8x128xf32> to vector<8x32xf32>
    %124 = arith.mulf %121, %103 : vector<8x32xf32>
    %125 = arith.mulf %120, %122 : vector<8x32xf32>
    %126 = arith.addf %124, %125 : vector<8x32xf32>
    %127 = math.tanh %126 : vector<8x32xf32>
    %128 = arith.mulf %123, %127 : vector<8x32xf32>
    %129 = arith.index_cast %108 : i32 to index
    %c0_34 = arith.constant 0 : index
    %130 = vector.load %arg10[%129, %c0_34] : memref<64x32xf32, #tpu.memory_space<vmem>>, vector<8x32xf32>
    tpu.vector_store %arg10[%129, %c0_34], %128 {strides = array<i32>} : memref<64x32xf32, #tpu.memory_space<vmem>>, vector<8x32xf32>,
    %c5_i32 = arith.constant 5 : i32
    %c8_i32_35 = arith.constant 8 : i32
    %131 = arith.muli %c5_i32, %c8_i32_35 : i32
    %132 = arith.index_cast %131 : i32 to index
    %c0_36 = arith.constant 0 : index
    %133 = vector.load %arg11[%132, %c0_36] : memref<64x128xf32, #tpu.memory_space<vmem>>, vector<8x128xf32>
    %cst_37 = arith.constant dense<0.000000e+00> : vector<8x128xf32>
    %134 = tpu.matmul %128, %14, %cst_37 {dimension_numbers = #tpu.dot_dimension_numbers<[1], [0], [0], [1], [0, 0, 1, 1], [], []>} : vector<8x32xf32>, vector<32x128xf32>, vector<8x128xf32> -> vector<8x128xf32>
    %135 = arith.addf %133, %134 : vector<8x128xf32>
    %136 = arith.negf %135 : vector<8x128xf32>
    %137 = math.exp %136 : vector<8x128xf32>
    %cst_38 = arith.constant 1.000000e+00 : f32
    %138 = vector.broadcast %cst_38 : f32 to vector<8x128xf32>
    %139 = arith.addf %138, %137 : vector<8x128xf32>
    %140 = arith.divf %138, %139 : vector<8x128xf32>
    %141 = math.tanh %135 : vector<8x128xf32>
    %142 = arith.select %5, %141, %140 : vector<8x128xi1>, vector<8x128xf32>
    %143 = vector.extract_strided_slice %142 {offsets = [0, 0], sizes = [8, 32], strides = [1, 1]} : vector<8x128xf32> to vector<8x32xf32>
    %144 = vector.extract_strided_slice %142 {offsets = [0, 32], sizes = [8, 32], strides = [1, 1]} : vector<8x128xf32> to vector<8x32xf32>
    %145 = vector.extract_strided_slice %142 {offsets = [0, 64], sizes = [8, 32], strides = [1, 1]} : vector<8x128xf32> to vector<8x32xf32>
    %146 = vector.extract_strided_slice %142 {offsets = [0, 96], sizes = [8, 32], strides = [1, 1]} : vector<8x128xf32> to vector<8x32xf32>
    %147 = arith.mulf %144, %126 : vector<8x32xf32>
    %148 = arith.mulf %143, %145 : vector<8x32xf32>
    %149 = arith.addf %147, %148 : vector<8x32xf32>
    %150 = math.tanh %149 : vector<8x32xf32>
    %151 = arith.mulf %146, %150 : vector<8x32xf32>
    %152 = arith.index_cast %131 : i32 to index
    %c0_39 = arith.constant 0 : index
    %153 = vector.load %arg10[%152, %c0_39] : memref<64x32xf32, #tpu.memory_space<vmem>>, vector<8x32xf32>
    tpu.vector_store %arg10[%152, %c0_39], %151 {strides = array<i32>} : memref<64x32xf32, #tpu.memory_space<vmem>>, vector<8x32xf32>,
    %c6_i32 = arith.constant 6 : i32
    %c8_i32_40 = arith.constant 8 : i32
    %154 = arith.muli %c6_i32, %c8_i32_40 : i32
    %155 = arith.index_cast %154 : i32 to index
    %c0_41 = arith.constant 0 : index
    %156 = vector.load %arg11[%155, %c0_41] : memref<64x128xf32, #tpu.memory_space<vmem>>, vector<8x128xf32>
    %cst_42 = arith.constant dense<0.000000e+00> : vector<8x128xf32>
    %157 = tpu.matmul %151, %14, %cst_42 {dimension_numbers = #tpu.dot_dimension_numbers<[1], [0], [0], [1], [0, 0, 1, 1], [], []>} : vector<8x32xf32>, vector<32x128xf32>, vector<8x128xf32> -> vector<8x128xf32>
    %158 = arith.addf %156, %157 : vector<8x128xf32>
    %159 = arith.negf %158 : vector<8x128xf32>
    %160 = math.exp %159 : vector<8x128xf32>
    %cst_43 = arith.constant 1.000000e+00 : f32
    %161 = vector.broadcast %cst_43 : f32 to vector<8x128xf32>
    %162 = arith.addf %161, %160 : vector<8x128xf32>
    %163 = arith.divf %161, %162 : vector<8x128xf32>
    %164 = math.tanh %158 : vector<8x128xf32>
    %165 = arith.select %5, %164, %163 : vector<8x128xi1>, vector<8x128xf32>
    %166 = vector.extract_strided_slice %165 {offsets = [0, 0], sizes = [8, 32], strides = [1, 1]} : vector<8x128xf32> to vector<8x32xf32>
    %167 = vector.extract_strided_slice %165 {offsets = [0, 32], sizes = [8, 32], strides = [1, 1]} : vector<8x128xf32> to vector<8x32xf32>
    %168 = vector.extract_strided_slice %165 {offsets = [0, 64], sizes = [8, 32], strides = [1, 1]} : vector<8x128xf32> to vector<8x32xf32>
    %169 = vector.extract_strided_slice %165 {offsets = [0, 96], sizes = [8, 32], strides = [1, 1]} : vector<8x128xf32> to vector<8x32xf32>
    %170 = arith.mulf %167, %149 : vector<8x32xf32>
    %171 = arith.mulf %166, %168 : vector<8x32xf32>
    %172 = arith.addf %170, %171 : vector<8x32xf32>
    %173 = math.tanh %172 : vector<8x32xf32>
    %174 = arith.mulf %169, %173 : vector<8x32xf32>
    %175 = arith.index_cast %154 : i32 to index
    %c0_44 = arith.constant 0 : index
    %176 = vector.load %arg10[%175, %c0_44] : memref<64x32xf32, #tpu.memory_space<vmem>>, vector<8x32xf32>
    tpu.vector_store %arg10[%175, %c0_44], %174 {strides = array<i32>} : memref<64x32xf32, #tpu.memory_space<vmem>>, vector<8x32xf32>,
    %c7_i32 = arith.constant 7 : i32
    %c8_i32_45 = arith.constant 8 : i32
    %177 = arith.muli %c7_i32, %c8_i32_45 : i32
    %178 = arith.index_cast %177 : i32 to index
    %c0_46 = arith.constant 0 : index
    %179 = vector.load %arg11[%178, %c0_46] : memref<64x128xf32, #tpu.memory_space<vmem>>, vector<8x128xf32>
    %cst_47 = arith.constant dense<0.000000e+00> : vector<8x128xf32>
    %180 = tpu.matmul %174, %14, %cst_47 {dimension_numbers = #tpu.dot_dimension_numbers<[1], [0], [0], [1], [0, 0, 1, 1], [], []>} : vector<8x32xf32>, vector<32x128xf32>, vector<8x128xf32> -> vector<8x128xf32>
    %181 = arith.addf %179, %180 : vector<8x128xf32>
    %182 = arith.negf %181 : vector<8x128xf32>
    %183 = math.exp %182 : vector<8x128xf32>
    %cst_48 = arith.constant 1.000000e+00 : f32
    %184 = vector.broadcast %cst_48 : f32 to vector<8x128xf32>
    %185 = arith.addf %184, %183 : vector<8x128xf32>
    %186 = arith.divf %184, %185 : vector<8x128xf32>
    %187 = math.tanh %181 : vector<8x128xf32>
    %188 = arith.select %5, %187, %186 : vector<8x128xi1>, vector<8x128xf32>
    %189 = vector.extract_strided_slice %188 {offsets = [0, 0], sizes = [8, 32], strides = [1, 1]} : vector<8x128xf32> to vector<8x32xf32>
    %190 = vector.extract_strided_slice %188 {offsets = [0, 32], sizes = [8, 32], strides = [1, 1]} : vector<8x128xf32> to vector<8x32xf32>
    %191 = vector.extract_strided_slice %188 {offsets = [0, 64], sizes = [8, 32], strides = [1, 1]} : vector<8x128xf32> to vector<8x32xf32>
    %192 = vector.extract_strided_slice %188 {offsets = [0, 96], sizes = [8, 32], strides = [1, 1]} : vector<8x128xf32> to vector<8x32xf32>
    %193 = arith.mulf %190, %172 : vector<8x32xf32>
    %194 = arith.mulf %189, %191 : vector<8x32xf32>
    %195 = arith.addf %193, %194 : vector<8x32xf32>
    %196 = math.tanh %195 : vector<8x32xf32>
    %197 = arith.mulf %192, %196 : vector<8x32xf32>
    %198 = arith.index_cast %177 : i32 to index
    %c0_49 = arith.constant 0 : index
    %199 = vector.load %arg10[%198, %c0_49] : memref<64x32xf32, #tpu.memory_space<vmem>>, vector<8x32xf32>
    tpu.vector_store %arg10[%198, %c0_49], %197 {strides = array<i32>} : memref<64x32xf32, #tpu.memory_space<vmem>>, vector<8x32xf32>,
    %c8_i32_50 = arith.constant 8 : i32
    %c0_51 = arith.constant 0 : index
    %c0_52 = arith.constant 0 : index
    %c0_53 = arith.constant 0 : index
    %200 = vector.load %arg8[%c0_51, %c0_52, %c0_53] : memref<2x8x32xf32, #tpu.memory_space<vmem>>, vector<1x8x32xf32>
    %201 = vector.shape_cast %200 : vector<1x8x32xf32> to vector<8x32xf32>
    %202 = vector.shape_cast %197 : vector<8x32xf32> to vector<1x8x32xf32>
    tpu.vector_store %arg8[%c0_51, %c0_52, %c0_53], %202 {strides = array<i32>} : memref<2x8x32xf32, #tpu.memory_space<vmem>>, vector<1x8x32xf32>,
    %c0_54 = arith.constant 0 : index
    %c0_55 = arith.constant 0 : index
    %c0_56 = arith.constant 0 : index
    %203 = vector.load %arg9[%c0_54, %c0_55, %c0_56] : memref<2x8x32xf32, #tpu.memory_space<vmem>>, vector<1x8x32xf32>
    %204 = vector.shape_cast %203 : vector<1x8x32xf32> to vector<8x32xf32>
    %205 = vector.shape_cast %195 : vector<8x32xf32> to vector<1x8x32xf32>
    tpu.vector_store %arg9[%c0_54, %c0_55, %c0_56], %205 {strides = array<i32>} : memref<2x8x32xf32, #tpu.memory_space<vmem>>, vector<1x8x32xf32>,
    %c0_57 = arith.constant 0 : index
    %c0_58 = arith.constant 0 : index
    %206 = vector.load %arg10[%c0_57, %c0_58] : memref<64x32xf32, #tpu.memory_space<vmem>>, vector<64x32xf32>
    %c0_59 = arith.constant 0 : index
    %c0_60 = arith.constant 0 : index
    %207 = vector.load %arg5[%c0_59, %c0_60] : memref<32x128xf32, #tpu.memory_space<vmem>>, vector<32x128xf32>
    %cst_61 = arith.constant dense<0.000000e+00> : vector<64x128xf32>
    %208 = tpu.matmul %206, %207, %cst_61 {dimension_numbers = #tpu.dot_dimension_numbers<[1], [0], [0], [1], [0, 0, 1, 1], [], []>} : vector<64x32xf32>, vector<32x128xf32>, vector<64x128xf32> -> vector<64x128xf32>
    %c0_62 = arith.constant 0 : index
    %c0_63 = arith.constant 0 : index
    %209 = vector.load %arg7[%c0_62, %c0_63] : memref<1x128xf32, #tpu.memory_space<vmem>>, vector<1x128xf32>
    %210 = vector.broadcast %209 : vector<1x128xf32> to vector<64x128xf32>
    %211 = arith.addf %208, %210 : vector<64x128xf32>
    %c0_64 = arith.constant 0 : index
    %c0_65 = arith.constant 0 : index
    %212 = vector.load %arg11[%c0_64, %c0_65] : memref<64x128xf32, #tpu.memory_space<vmem>>, vector<64x128xf32>
    tpu.vector_store %arg11[%c0_64, %c0_65], %211 {strides = array<i32>} : memref<64x128xf32, #tpu.memory_space<vmem>>, vector<64x128xf32>,
    %c0_66 = arith.constant 0 : index
    %c0_67 = arith.constant 0 : index
    %213 = vector.load %arg6[%c0_66, %c0_67] : memref<32x128xf32, #tpu.memory_space<vmem>>, vector<32x128xf32>
    %cst_68 = arith.constant 0.000000e+00 : f32
    %214 = vector.broadcast %cst_68 : f32 to vector<8x32xf32>
    %c0_i32_69 = arith.constant 0 : i32
    %c8_i32_70 = arith.constant 8 : i32
    %215 = arith.muli %c0_i32_69, %c8_i32_70 : i32
    %216 = arith.index_cast %215 : i32 to index
    %c0_71 = arith.constant 0 : index
    %217 = vector.load %arg11[%216, %c0_71] : memref<64x128xf32, #tpu.memory_space<vmem>>, vector<8x128xf32>
    %cst_72 = arith.constant dense<0.000000e+00> : vector<8x128xf32>
    %218 = tpu.matmul %214, %213, %cst_72 {dimension_numbers = #tpu.dot_dimension_numbers<[1], [0], [0], [1], [0, 0, 1, 1], [], []>} : vector<8x32xf32>, vector<32x128xf32>, vector<8x128xf32> -> vector<8x128xf32>
    %219 = arith.addf %217, %218 : vector<8x128xf32>
    %220 = arith.negf %219 : vector<8x128xf32>
    %221 = math.exp %220 : vector<8x128xf32>
    %cst_73 = arith.constant 1.000000e+00 : f32
    %222 = vector.broadcast %cst_73 : f32 to vector<8x128xf32>
    %223 = arith.addf %222, %221 : vector<8x128xf32>
    %224 = arith.divf %222, %223 : vector<8x128xf32>
    %225 = math.tanh %219 : vector<8x128xf32>
    %226 = arith.select %5, %225, %224 : vector<8x128xi1>, vector<8x128xf32>
    %227 = vector.extract_strided_slice %226 {offsets = [0, 0], sizes = [8, 32], strides = [1, 1]} : vector<8x128xf32> to vector<8x32xf32>
    %228 = vector.extract_strided_slice %226 {offsets = [0, 32], sizes = [8, 32], strides = [1, 1]} : vector<8x128xf32> to vector<8x32xf32>
    %229 = vector.extract_strided_slice %226 {offsets = [0, 64], sizes = [8, 32], strides = [1, 1]} : vector<8x128xf32> to vector<8x32xf32>
    %230 = vector.extract_strided_slice %226 {offsets = [0, 96], sizes = [8, 32], strides = [1, 1]} : vector<8x128xf32> to vector<8x32xf32>
    %231 = arith.mulf %228, %214 : vector<8x32xf32>
    %232 = arith.mulf %227, %229 : vector<8x32xf32>
    %233 = arith.addf %231, %232 : vector<8x32xf32>
    %234 = math.tanh %233 : vector<8x32xf32>
    %235 = arith.mulf %230, %234 : vector<8x32xf32>
    %236 = arith.index_cast %215 : i32 to index
    %c0_74 = arith.constant 0 : index
    %237 = vector.load %arg10[%236, %c0_74] : memref<64x32xf32, #tpu.memory_space<vmem>>, vector<8x32xf32>
    tpu.vector_store %arg10[%236, %c0_74], %235 {strides = array<i32>} : memref<64x32xf32, #tpu.memory_space<vmem>>, vector<8x32xf32>,
    %c1_i32_75 = arith.constant 1 : i32
    %c8_i32_76 = arith.constant 8 : i32
    %238 = arith.muli %c1_i32_75, %c8_i32_76 : i32
    %239 = arith.index_cast %238 : i32 to index
    %c0_77 = arith.constant 0 : index
    %240 = vector.load %arg11[%239, %c0_77] : memref<64x128xf32, #tpu.memory_space<vmem>>, vector<8x128xf32>
    %cst_78 = arith.constant dense<0.000000e+00> : vector<8x128xf32>
    %241 = tpu.matmul %235, %213, %cst_78 {dimension_numbers = #tpu.dot_dimension_numbers<[1], [0], [0], [1], [0, 0, 1, 1], [], []>} : vector<8x32xf32>, vector<32x128xf32>, vector<8x128xf32> -> vector<8x128xf32>
    %242 = arith.addf %240, %241 : vector<8x128xf32>
    %243 = arith.negf %242 : vector<8x128xf32>
    %244 = math.exp %243 : vector<8x128xf32>
    %cst_79 = arith.constant 1.000000e+00 : f32
    %245 = vector.broadcast %cst_79 : f32 to vector<8x128xf32>
    %246 = arith.addf %245, %244 : vector<8x128xf32>
    %247 = arith.divf %245, %246 : vector<8x128xf32>
    %248 = math.tanh %242 : vector<8x128xf32>
    %249 = arith.select %5, %248, %247 : vector<8x128xi1>, vector<8x128xf32>
    %250 = vector.extract_strided_slice %249 {offsets = [0, 0], sizes = [8, 32], strides = [1, 1]} : vector<8x128xf32> to vector<8x32xf32>
    %251 = vector.extract_strided_slice %249 {offsets = [0, 32], sizes = [8, 32], strides = [1, 1]} : vector<8x128xf32> to vector<8x32xf32>
    %252 = vector.extract_strided_slice %249 {offsets = [0, 64], sizes = [8, 32], strides = [1, 1]} : vector<8x128xf32> to vector<8x32xf32>
    %253 = vector.extract_strided_slice %249 {offsets = [0, 96], sizes = [8, 32], strides = [1, 1]} : vector<8x128xf32> to vector<8x32xf32>
    %254 = arith.mulf %251, %233 : vector<8x32xf32>
    %255 = arith.mulf %250, %252 : vector<8x32xf32>
    %256 = arith.addf %254, %255 : vector<8x32xf32>
    %257 = math.tanh %256 : vector<8x32xf32>
    %258 = arith.mulf %253, %257 : vector<8x32xf32>
    %259 = arith.index_cast %238 : i32 to index
    %c0_80 = arith.constant 0 : index
    %260 = vector.load %arg10[%259, %c0_80] : memref<64x32xf32, #tpu.memory_space<vmem>>, vector<8x32xf32>
    tpu.vector_store %arg10[%259, %c0_80], %258 {strides = array<i32>} : memref<64x32xf32, #tpu.memory_space<vmem>>, vector<8x32xf32>,
    %c2_i32_81 = arith.constant 2 : i32
    %c8_i32_82 = arith.constant 8 : i32
    %261 = arith.muli %c2_i32_81, %c8_i32_82 : i32
    %262 = arith.index_cast %261 : i32 to index
    %c0_83 = arith.constant 0 : index
    %263 = vector.load %arg11[%262, %c0_83] : memref<64x128xf32, #tpu.memory_space<vmem>>, vector<8x128xf32>
    %cst_84 = arith.constant dense<0.000000e+00> : vector<8x128xf32>
    %264 = tpu.matmul %258, %213, %cst_84 {dimension_numbers = #tpu.dot_dimension_numbers<[1], [0], [0], [1], [0, 0, 1, 1], [], []>} : vector<8x32xf32>, vector<32x128xf32>, vector<8x128xf32> -> vector<8x128xf32>
    %265 = arith.addf %263, %264 : vector<8x128xf32>
    %266 = arith.negf %265 : vector<8x128xf32>
    %267 = math.exp %266 : vector<8x128xf32>
    %cst_85 = arith.constant 1.000000e+00 : f32
    %268 = vector.broadcast %cst_85 : f32 to vector<8x128xf32>
    %269 = arith.addf %268, %267 : vector<8x128xf32>
    %270 = arith.divf %268, %269 : vector<8x128xf32>
    %271 = math.tanh %265 : vector<8x128xf32>
    %272 = arith.select %5, %271, %270 : vector<8x128xi1>, vector<8x128xf32>
    %273 = vector.extract_strided_slice %272 {offsets = [0, 0], sizes = [8, 32], strides = [1, 1]} : vector<8x128xf32> to vector<8x32xf32>
    %274 = vector.extract_strided_slice %272 {offsets = [0, 32], sizes = [8, 32], strides = [1, 1]} : vector<8x128xf32> to vector<8x32xf32>
    %275 = vector.extract_strided_slice %272 {offsets = [0, 64], sizes = [8, 32], strides = [1, 1]} : vector<8x128xf32> to vector<8x32xf32>
    %276 = vector.extract_strided_slice %272 {offsets = [0, 96], sizes = [8, 32], strides = [1, 1]} : vector<8x128xf32> to vector<8x32xf32>
    %277 = arith.mulf %274, %256 : vector<8x32xf32>
    %278 = arith.mulf %273, %275 : vector<8x32xf32>
    %279 = arith.addf %277, %278 : vector<8x32xf32>
    %280 = math.tanh %279 : vector<8x32xf32>
    %281 = arith.mulf %276, %280 : vector<8x32xf32>
    %282 = arith.index_cast %261 : i32 to index
    %c0_86 = arith.constant 0 : index
    %283 = vector.load %arg10[%282, %c0_86] : memref<64x32xf32, #tpu.memory_space<vmem>>, vector<8x32xf32>
    tpu.vector_store %arg10[%282, %c0_86], %281 {strides = array<i32>} : memref<64x32xf32, #tpu.memory_space<vmem>>, vector<8x32xf32>,
    %c3_i32_87 = arith.constant 3 : i32
    %c8_i32_88 = arith.constant 8 : i32
    %284 = arith.muli %c3_i32_87, %c8_i32_88 : i32
    %285 = arith.index_cast %284 : i32 to index
    %c0_89 = arith.constant 0 : index
    %286 = vector.load %arg11[%285, %c0_89] : memref<64x128xf32, #tpu.memory_space<vmem>>, vector<8x128xf32>
    %cst_90 = arith.constant dense<0.000000e+00> : vector<8x128xf32>
    %287 = tpu.matmul %281, %213, %cst_90 {dimension_numbers = #tpu.dot_dimension_numbers<[1], [0], [0], [1], [0, 0, 1, 1], [], []>} : vector<8x32xf32>, vector<32x128xf32>, vector<8x128xf32> -> vector<8x128xf32>
    %288 = arith.addf %286, %287 : vector<8x128xf32>
    %289 = arith.negf %288 : vector<8x128xf32>
    %290 = math.exp %289 : vector<8x128xf32>
    %cst_91 = arith.constant 1.000000e+00 : f32
    %291 = vector.broadcast %cst_91 : f32 to vector<8x128xf32>
    %292 = arith.addf %291, %290 : vector<8x128xf32>
    %293 = arith.divf %291, %292 : vector<8x128xf32>
    %294 = math.tanh %288 : vector<8x128xf32>
    %295 = arith.select %5, %294, %293 : vector<8x128xi1>, vector<8x128xf32>
    %296 = vector.extract_strided_slice %295 {offsets = [0, 0], sizes = [8, 32], strides = [1, 1]} : vector<8x128xf32> to vector<8x32xf32>
    %297 = vector.extract_strided_slice %295 {offsets = [0, 32], sizes = [8, 32], strides = [1, 1]} : vector<8x128xf32> to vector<8x32xf32>
    %298 = vector.extract_strided_slice %295 {offsets = [0, 64], sizes = [8, 32], strides = [1, 1]} : vector<8x128xf32> to vector<8x32xf32>
    %299 = vector.extract_strided_slice %295 {offsets = [0, 96], sizes = [8, 32], strides = [1, 1]} : vector<8x128xf32> to vector<8x32xf32>
    %300 = arith.mulf %297, %279 : vector<8x32xf32>
    %301 = arith.mulf %296, %298 : vector<8x32xf32>
    %302 = arith.addf %300, %301 : vector<8x32xf32>
    %303 = math.tanh %302 : vector<8x32xf32>
    %304 = arith.mulf %299, %303 : vector<8x32xf32>
    %305 = arith.index_cast %284 : i32 to index
    %c0_92 = arith.constant 0 : index
    %306 = vector.load %arg10[%305, %c0_92] : memref<64x32xf32, #tpu.memory_space<vmem>>, vector<8x32xf32>
    tpu.vector_store %arg10[%305, %c0_92], %304 {strides = array<i32>} : memref<64x32xf32, #tpu.memory_space<vmem>>, vector<8x32xf32>,
    %c4_i32_93 = arith.constant 4 : i32
    %c8_i32_94 = arith.constant 8 : i32
    %307 = arith.muli %c4_i32_93, %c8_i32_94 : i32
    %308 = arith.index_cast %307 : i32 to index
    %c0_95 = arith.constant 0 : index
    %309 = vector.load %arg11[%308, %c0_95] : memref<64x128xf32, #tpu.memory_space<vmem>>, vector<8x128xf32>
    %cst_96 = arith.constant dense<0.000000e+00> : vector<8x128xf32>
    %310 = tpu.matmul %304, %213, %cst_96 {dimension_numbers = #tpu.dot_dimension_numbers<[1], [0], [0], [1], [0, 0, 1, 1], [], []>} : vector<8x32xf32>, vector<32x128xf32>, vector<8x128xf32> -> vector<8x128xf32>
    %311 = arith.addf %309, %310 : vector<8x128xf32>
    %312 = arith.negf %311 : vector<8x128xf32>
    %313 = math.exp %312 : vector<8x128xf32>
    %cst_97 = arith.constant 1.000000e+00 : f32
    %314 = vector.broadcast %cst_97 : f32 to vector<8x128xf32>
    %315 = arith.addf %314, %313 : vector<8x128xf32>
    %316 = arith.divf %314, %315 : vector<8x128xf32>
    %317 = math.tanh %311 : vector<8x128xf32>
    %318 = arith.select %5, %317, %316 : vector<8x128xi1>, vector<8x128xf32>
    %319 = vector.extract_strided_slice %318 {offsets = [0, 0], sizes = [8, 32], strides = [1, 1]} : vector<8x128xf32> to vector<8x32xf32>
    %320 = vector.extract_strided_slice %318 {offsets = [0, 32], sizes = [8, 32], strides = [1, 1]} : vector<8x128xf32> to vector<8x32xf32>
    %321 = vector.extract_strided_slice %318 {offsets = [0, 64], sizes = [8, 32], strides = [1, 1]} : vector<8x128xf32> to vector<8x32xf32>
    %322 = vector.extract_strided_slice %318 {offsets = [0, 96], sizes = [8, 32], strides = [1, 1]} : vector<8x128xf32> to vector<8x32xf32>
    %323 = arith.mulf %320, %302 : vector<8x32xf32>
    %324 = arith.mulf %319, %321 : vector<8x32xf32>
    %325 = arith.addf %323, %324 : vector<8x32xf32>
    %326 = math.tanh %325 : vector<8x32xf32>
    %327 = arith.mulf %322, %326 : vector<8x32xf32>
    %328 = arith.index_cast %307 : i32 to index
    %c0_98 = arith.constant 0 : index
    %329 = vector.load %arg10[%328, %c0_98] : memref<64x32xf32, #tpu.memory_space<vmem>>, vector<8x32xf32>
    tpu.vector_store %arg10[%328, %c0_98], %327 {strides = array<i32>} : memref<64x32xf32, #tpu.memory_space<vmem>>, vector<8x32xf32>,
    %c5_i32_99 = arith.constant 5 : i32
    %c8_i32_100 = arith.constant 8 : i32
    %330 = arith.muli %c5_i32_99, %c8_i32_100 : i32
    %331 = arith.index_cast %330 : i32 to index
    %c0_101 = arith.constant 0 : index
    %332 = vector.load %arg11[%331, %c0_101] : memref<64x128xf32, #tpu.memory_space<vmem>>, vector<8x128xf32>
    %cst_102 = arith.constant dense<0.000000e+00> : vector<8x128xf32>
    %333 = tpu.matmul %327, %213, %cst_102 {dimension_numbers = #tpu.dot_dimension_numbers<[1], [0], [0], [1], [0, 0, 1, 1], [], []>} : vector<8x32xf32>, vector<32x128xf32>, vector<8x128xf32> -> vector<8x128xf32>
    %334 = arith.addf %332, %333 : vector<8x128xf32>
    %335 = arith.negf %334 : vector<8x128xf32>
    %336 = math.exp %335 : vector<8x128xf32>
    %cst_103 = arith.constant 1.000000e+00 : f32
    %337 = vector.broadcast %cst_103 : f32 to vector<8x128xf32>
    %338 = arith.addf %337, %336 : vector<8x128xf32>
    %339 = arith.divf %337, %338 : vector<8x128xf32>
    %340 = math.tanh %334 : vector<8x128xf32>
    %341 = arith.select %5, %340, %339 : vector<8x128xi1>, vector<8x128xf32>
    %342 = vector.extract_strided_slice %341 {offsets = [0, 0], sizes = [8, 32], strides = [1, 1]} : vector<8x128xf32> to vector<8x32xf32>
    %343 = vector.extract_strided_slice %341 {offsets = [0, 32], sizes = [8, 32], strides = [1, 1]} : vector<8x128xf32> to vector<8x32xf32>
    %344 = vector.extract_strided_slice %341 {offsets = [0, 64], sizes = [8, 32], strides = [1, 1]} : vector<8x128xf32> to vector<8x32xf32>
    %345 = vector.extract_strided_slice %341 {offsets = [0, 96], sizes = [8, 32], strides = [1, 1]} : vector<8x128xf32> to vector<8x32xf32>
    %346 = arith.mulf %343, %325 : vector<8x32xf32>
    %347 = arith.mulf %342, %344 : vector<8x32xf32>
    %348 = arith.addf %346, %347 : vector<8x32xf32>
    %349 = math.tanh %348 : vector<8x32xf32>
    %350 = arith.mulf %345, %349 : vector<8x32xf32>
    %351 = arith.index_cast %330 : i32 to index
    %c0_104 = arith.constant 0 : index
    %352 = vector.load %arg10[%351, %c0_104] : memref<64x32xf32, #tpu.memory_space<vmem>>, vector<8x32xf32>
    tpu.vector_store %arg10[%351, %c0_104], %350 {strides = array<i32>} : memref<64x32xf32, #tpu.memory_space<vmem>>, vector<8x32xf32>,
    %c6_i32_105 = arith.constant 6 : i32
    %c8_i32_106 = arith.constant 8 : i32
    %353 = arith.muli %c6_i32_105, %c8_i32_106 : i32
    %354 = arith.index_cast %353 : i32 to index
    %c0_107 = arith.constant 0 : index
    %355 = vector.load %arg11[%354, %c0_107] : memref<64x128xf32, #tpu.memory_space<vmem>>, vector<8x128xf32>
    %cst_108 = arith.constant dense<0.000000e+00> : vector<8x128xf32>
    %356 = tpu.matmul %350, %213, %cst_108 {dimension_numbers = #tpu.dot_dimension_numbers<[1], [0], [0], [1], [0, 0, 1, 1], [], []>} : vector<8x32xf32>, vector<32x128xf32>, vector<8x128xf32> -> vector<8x128xf32>
    %357 = arith.addf %355, %356 : vector<8x128xf32>
    %358 = arith.negf %357 : vector<8x128xf32>
    %359 = math.exp %358 : vector<8x128xf32>
    %cst_109 = arith.constant 1.000000e+00 : f32
    %360 = vector.broadcast %cst_109 : f32 to vector<8x128xf32>
    %361 = arith.addf %360, %359 : vector<8x128xf32>
    %362 = arith.divf %360, %361 : vector<8x128xf32>
    %363 = math.tanh %357 : vector<8x128xf32>
    %364 = arith.select %5, %363, %362 : vector<8x128xi1>, vector<8x128xf32>
    %365 = vector.extract_strided_slice %364 {offsets = [0, 0], sizes = [8, 32], strides = [1, 1]} : vector<8x128xf32> to vector<8x32xf32>
    %366 = vector.extract_strided_slice %364 {offsets = [0, 32], sizes = [8, 32], strides = [1, 1]} : vector<8x128xf32> to vector<8x32xf32>
    %367 = vector.extract_strided_slice %364 {offsets = [0, 64], sizes = [8, 32], strides = [1, 1]} : vector<8x128xf32> to vector<8x32xf32>
    %368 = vector.extract_strided_slice %364 {offsets = [0, 96], sizes = [8, 32], strides = [1, 1]} : vector<8x128xf32> to vector<8x32xf32>
    %369 = arith.mulf %366, %348 : vector<8x32xf32>
    %370 = arith.mulf %365, %367 : vector<8x32xf32>
    %371 = arith.addf %369, %370 : vector<8x32xf32>
    %372 = math.tanh %371 : vector<8x32xf32>
    %373 = arith.mulf %368, %372 : vector<8x32xf32>
    %374 = arith.index_cast %353 : i32 to index
    %c0_110 = arith.constant 0 : index
    %375 = vector.load %arg10[%374, %c0_110] : memref<64x32xf32, #tpu.memory_space<vmem>>, vector<8x32xf32>
    tpu.vector_store %arg10[%374, %c0_110], %373 {strides = array<i32>} : memref<64x32xf32, #tpu.memory_space<vmem>>, vector<8x32xf32>,
    %c7_i32_111 = arith.constant 7 : i32
    %c8_i32_112 = arith.constant 8 : i32
    %376 = arith.muli %c7_i32_111, %c8_i32_112 : i32
    %377 = arith.index_cast %376 : i32 to index
    %c0_113 = arith.constant 0 : index
    %378 = vector.load %arg11[%377, %c0_113] : memref<64x128xf32, #tpu.memory_space<vmem>>, vector<8x128xf32>
    %cst_114 = arith.constant dense<0.000000e+00> : vector<8x128xf32>
    %379 = tpu.matmul %373, %213, %cst_114 {dimension_numbers = #tpu.dot_dimension_numbers<[1], [0], [0], [1], [0, 0, 1, 1], [], []>} : vector<8x32xf32>, vector<32x128xf32>, vector<8x128xf32> -> vector<8x128xf32>
    %380 = arith.addf %378, %379 : vector<8x128xf32>
    %381 = arith.negf %380 : vector<8x128xf32>
    %382 = math.exp %381 : vector<8x128xf32>
    %cst_115 = arith.constant 1.000000e+00 : f32
    %383 = vector.broadcast %cst_115 : f32 to vector<8x128xf32>
    %384 = arith.addf %383, %382 : vector<8x128xf32>
    %385 = arith.divf %383, %384 : vector<8x128xf32>
    %386 = math.tanh %380 : vector<8x128xf32>
    %387 = arith.select %5, %386, %385 : vector<8x128xi1>, vector<8x128xf32>
    %388 = vector.extract_strided_slice %387 {offsets = [0, 0], sizes = [8, 32], strides = [1, 1]} : vector<8x128xf32> to vector<8x32xf32>
    %389 = vector.extract_strided_slice %387 {offsets = [0, 32], sizes = [8, 32], strides = [1, 1]} : vector<8x128xf32> to vector<8x32xf32>
    %390 = vector.extract_strided_slice %387 {offsets = [0, 64], sizes = [8, 32], strides = [1, 1]} : vector<8x128xf32> to vector<8x32xf32>
    %391 = vector.extract_strided_slice %387 {offsets = [0, 96], sizes = [8, 32], strides = [1, 1]} : vector<8x128xf32> to vector<8x32xf32>
    %392 = arith.mulf %389, %371 : vector<8x32xf32>
    %393 = arith.mulf %388, %390 : vector<8x32xf32>
    %394 = arith.addf %392, %393 : vector<8x32xf32>
    %395 = math.tanh %394 : vector<8x32xf32>
    %396 = arith.mulf %391, %395 : vector<8x32xf32>
    %397 = arith.index_cast %376 : i32 to index
    %c0_116 = arith.constant 0 : index
    %398 = vector.load %arg10[%397, %c0_116] : memref<64x32xf32, #tpu.memory_space<vmem>>, vector<8x32xf32>
    tpu.vector_store %arg10[%397, %c0_116], %396 {strides = array<i32>} : memref<64x32xf32, #tpu.memory_space<vmem>>, vector<8x32xf32>,
    %c8_i32_117 = arith.constant 8 : i32
    %c1 = arith.constant 1 : index
    %c0_118 = arith.constant 0 : index
    %c0_119 = arith.constant 0 : index
    %399 = vector.load %arg8[%c1, %c0_118, %c0_119] : memref<2x8x32xf32, #tpu.memory_space<vmem>>, vector<1x8x32xf32>
    %400 = vector.shape_cast %399 : vector<1x8x32xf32> to vector<8x32xf32>
    %401 = vector.shape_cast %396 : vector<8x32xf32> to vector<1x8x32xf32>
    tpu.vector_store %arg8[%c1, %c0_118, %c0_119], %401 {strides = array<i32>} : memref<2x8x32xf32, #tpu.memory_space<vmem>>, vector<1x8x32xf32>,
    %c1_120 = arith.constant 1 : index
    %c0_121 = arith.constant 0 : index
    %c0_122 = arith.constant 0 : index
    %402 = vector.load %arg9[%c1_120, %c0_121, %c0_122] : memref<2x8x32xf32, #tpu.memory_space<vmem>>, vector<1x8x32xf32>
    %403 = vector.shape_cast %402 : vector<1x8x32xf32> to vector<8x32xf32>
    %404 = vector.shape_cast %394 : vector<8x32xf32> to vector<1x8x32xf32>
    tpu.vector_store %arg9[%c1_120, %c0_121, %c0_122], %404 {strides = array<i32>} : memref<2x8x32xf32, #tpu.memory_space<vmem>>, vector<1x8x32xf32>,
    return
  }
  func.func @transform_0(%arg0: i32) -> (i32, i32, i32) {
    %c0_i32 = arith.constant 0 : i32
    %c0_i32_0 = arith.constant 0 : i32
    %c0_i32_1 = arith.constant 0 : i32
    %c0_i32_2 = arith.constant 0 : i32
    return %c0_i32, %c0_i32_0, %c0_i32_1 : i32, i32, i32
  }
  func.func @transform_1(%arg0: i32) -> (i32, i32) {
    %c0_i32 = arith.constant 0 : i32
    %c0_i32_0 = arith.constant 0 : i32
    %c0_i32_1 = arith.constant 0 : i32
    return %c0_i32, %c0_i32_0 : i32, i32
  }
  func.func @transform_2(%arg0: i32) -> (i32, i32) {
    %c0_i32 = arith.constant 0 : i32
    %c0_i32_0 = arith.constant 0 : i32
    %c0_i32_1 = arith.constant 0 : i32
    return %c0_i32, %c0_i32_0 : i32, i32
  }
  func.func @transform_3(%arg0: i32) -> (i32, i32) {
    %c0_i32 = arith.constant 0 : i32
    %c0_i32_0 = arith.constant 0 : i32
    %c0_i32_1 = arith.constant 0 : i32
    return %c0_i32, %c0_i32_0 : i32, i32
  }
  func.func @transform_4(%arg0: i32) -> (i32, i32) {
    %c0_i32 = arith.constant 0 : i32
    %c0_i32_0 = arith.constant 0 : i32
    %c0_i32_1 = arith.constant 0 : i32
    return %c0_i32, %c0_i32_0 : i32, i32
  }
  func.func @transform_5(%arg0: i32) -> (i32, i32) {
    %c0_i32 = arith.constant 0 : i32
    %c0_i32_0 = arith.constant 0 : i32
    %c0_i32_1 = arith.constant 0 : i32
    return %c0_i32, %c0_i32_0 : i32, i32
  }
  func.func @transform_6(%arg0: i32) -> (i32, i32) {
    %c0_i32 = arith.constant 0 : i32
    %c0_i32_0 = arith.constant 0 : i32
    %c0_i32_1 = arith.constant 0 : i32
    return %c0_i32, %c0_i32_0 : i32, i32
  }
  func.func @transform_7(%arg0: i32) -> (i32, i32, i32) {
    %c0_i32 = arith.constant 0 : i32
    %c0_i32_0 = arith.constant 0 : i32
    %c0_i32_1 = arith.constant 0 : i32
    %c0_i32_2 = arith.constant 0 : i32
    return %c0_i32, %c0_i32_0, %c0_i32_1 : i32, i32, i32
  }
  func.func @transform_8(%arg0: i32) -> (i32, i32, i32) {
    %c0_i32 = arith.constant 0 : i32
    %c0_i32_0 = arith.constant 0 : i32
    %c0_i32_1 = arith.constant 0 : i32
    %c0_i32_2 = arith.constant 0 : i32
    return %c0_i32, %c0_i32_0, %c0_i32_1 : i32, i32, i32
  }
}

</mosaic_0001>

<llo_original>
// kernel: encoder_forward.1
$region0: #{encoder_forward.1}
  #allocation0 [shape = 'u32[]', space=smem, size = 0x4, offset = 0x4, fixed_abs, tag = 'smem constant byte address 0x4 - core index']
  #allocation1 [shape = 'u32[144,128]{1,0:T(1,128)}', space=vmem, size = 0x12000, scoped, tag = 'internal scratch']
  #allocation2 [shape = 'f32[64,32]{1,0:T(8,128)}', space=vmem, size = 0x8000, scoped, tag = 'scratch operand']
  #allocation3 [shape = 'f32[64,128]{1,0:T(8,128)}', space=vmem, size = 0x8000, scoped, tag = 'scratch operand']
  %s0 = inlined_call_operand.vmem [shape: f32[8,8,16], index: 0, kind: input, shape index: {}]
  %s1 = inlined_call_operand.vmem [shape: f32[16,128], index: 1, kind: input, shape index: {}]
  %s2 = inlined_call_operand.vmem [shape: f32[32,128], index: 2, kind: input, shape index: {}]
  %s3 = inlined_call_operand.vmem [shape: f32[1,128], index: 3, kind: input, shape index: {}]
  %s4 = inlined_call_operand.vmem [shape: f32[32,128], index: 4, kind: input, shape index: {}]
  %s5 = inlined_call_operand.vmem [shape: f32[32,128], index: 5, kind: input, shape index: {}]
  %s6 = inlined_call_operand.vmem [shape: f32[1,128], index: 6, kind: input, shape index: {}]
  %s7 = inlined_call_operand.vmem [shape: f32[2,8,32], index: 7, kind: output, shape index: {0}]
  %s8 = inlined_call_operand.vmem [shape: f32[2,8,32], index: 8, kind: output, shape index: {1}]
  %9 = xla_tuple %s7, %s8
  %s10 = sld [smem:[#allocation0]]
  $region46: #{encoder_forward.1} parent=0
    _
  %s12 = ssub.s32 1, %s10
  %s13 = scalar_select 0, %s12, %s10
  // Predicated region
  $region2: #{encoder_forward.1} parent=0 // pred_check
    _
  $region3: #{encoder_forward.1} parent=0 // pred_check_branch
    %15 = sbr.rel (0) target = $region5
  $region4: #{encoder_forward.1} parent=0 // pred_region
    _
  $region5: #{encoder_forward.1} parent=0 // pred_fallthru
    _
  // Predicated region
  $region6: #{encoder_forward.1} parent=0 // pred_check
    _
  $region7: #{encoder_forward.1} parent=0 // pred_check_branch
    %17 = sbr.rel (0) target = $region9
  $region8: #{encoder_forward.1} parent=0 // pred_region
    _
  $region9: #{encoder_forward.1} parent=0 // pred_fallthru
    _
  // Predicated region
  $region10: #{encoder_forward.1} parent=0 // pred_check
    _
  $region11: #{encoder_forward.1} parent=0 // pred_check_branch
    %19 = sbr.rel (0) target = $region13
  $region12: #{encoder_forward.1} parent=0 // pred_region
    _
  $region13: #{encoder_forward.1} parent=0 // pred_fallthru
    _
  // Predicated region
  $region14: #{encoder_forward.1} parent=0 // pred_check
    _
  $region15: #{encoder_forward.1} parent=0 // pred_check_branch
    %21 = sbr.rel (0) target = $region17
  $region16: #{encoder_forward.1} parent=0 // pred_region
    _
  $region17: #{encoder_forward.1} parent=0 // pred_fallthru
    _
  // Predicated region
  $region18: #{encoder_forward.1} parent=0 // pred_check
    _
  $region19: #{encoder_forward.1} parent=0 // pred_check_branch
    %23 = sbr.rel (0) target = $region21
  $region20: #{encoder_forward.1} parent=0 // pred_region
    _
  $region21: #{encoder_forward.1} parent=0 // pred_fallthru
    _
  // Predicated region
  $region22: #{encoder_forward.1} parent=0 // pred_check
    _
  $region23: #{encoder_forward.1} parent=0 // pred_check_branch
    %25 = sbr.rel (0) target = $region25
  $region24: #{encoder_forward.1} parent=0 // pred_region
    _
  $region25: #{encoder_forward.1} parent=0 // pred_fallthru
    _
  // Predicated region
  $region26: #{encoder_forward.1} parent=0 // pred_check
    _
  $region27: #{encoder_forward.1} parent=0 // pred_check_branch
    %27 = sbr.rel (0) target = $region29
  $region28: #{encoder_forward.1} parent=0 // pred_region
    _
  $region29: #{encoder_forward.1} parent=0 // pred_fallthru
    _
  %v28 = vlaneseq
  %v29 = vand.u32 %v28, 127
  %vm30 = vcmp.ge.s32.totalorder %v29, 64
  %vm31 = vcmp.lt.s32.totalorder %v29, 96
  %vm32 = vmand %vm30, %vm31
  %v33 = vld [vmem:[%s0] sm:$0xff]
  %v34 = vld [vmem:[%s0 + $0x8] sm:$0xff]
  %v35 = vld [vmem:[%s0 + $0x10] sm:$0xff]
  %v36 = vld [vmem:[%s0 + $0x18] sm:$0xff]
  %v37 = vld [vmem:[%s0 + $0x20] sm:$0xff]
  %v38 = vld [vmem:[%s0 + $0x28] sm:$0xff]
  %v39 = vld [vmem:[%s0 + $0x30] sm:$0xff]
  %v40 = vld [vmem:[%s0 + $0x38] sm:$0xff]
  %v41 = vld [vmem:[%s1] sm:$0xff]
  %v42 = vld [vmem:[%s1 + $0x8] sm:$0xff]
  %v43 = vld [vmem:[%s3] sm:$0x1]
  %v45 = vlaneseq
  %v46 = vshrl.u32 %v45, 7
  %v47 = vsub.s32 0, %v46
  %v48 = vrot.slane %v43, %v47
  %vm50 = vcmask 130048
  %v52 = vsel %vm50, %v33, 0
  %v55 = vsel %vm50, %v34, 0
  %v58 = vsel %vm50, %v35, 0
  %v61 = vsel %vm50, %v36, 0
  %v64 = vsel %vm50, %v37, 0
  %v67 = vsel %vm50, %v38, 0
  %v70 = vsel %vm50, %v39, 0
  %v73 = vsel %vm50, %v40, 0
  %75 = vmatprep.subr.mxu0 0.0
  %76 = vmatpush1.msra.mxu0 %v41
  %77 = vmatprep.subr.mxu0 0.0
  %78 = vmatpush1.msra.mxu0 %v42
  %79 = vmatprep.subr.mxu0 0.0
  %80 = vmatpush1.msra.mxu0 0.0
  %81 = vmatprep.subr.mxu0 0.0
  %82 = vmatpush1.msra.mxu0 0.0
  %83 = vmatprep.subr.mxu0 0.0
  %84 = vmatpush1.msra.mxu0 0.0
  %85 = vmatprep.subr.mxu0 0.0
  %86 = vmatpush1.msra.mxu0 0.0
  %87 = vmatprep.subr.mxu0 0.0
  %88 = vmatpush1.msra.mxu0 0.0
  %89 = vmatprep.subr.mxu0 0.0
  %90 = vmatpush1.msra.mxu0 0.0
  %91 = vmatprep.subr.mxu0 0.0
  %92 = vmatpush1.msra.mxu0 0.0
  %93 = vmatprep.subr.mxu0 0.0
  %94 = vmatpush1.msra.mxu0 0.0
  %95 = vmatprep.subr.mxu0 0.0
  %96 = vmatpush1.msra.mxu0 0.0
  %97 = vmatprep.subr.mxu0 0.0
  %98 = vmatpush1.msra.mxu0 0.0
  %99 = vmatprep.subr.mxu0 0.0
  %100 = vmatpush1.msra.mxu0 0.0
  %101 = vmatprep.subr.mxu0 0.0
  %102 = vmatpush1.msra.mxu0 0.0
  %103 = vmatprep.subr.mxu0 0.0
  %104 = vmatpush1.msra.mxu0 0.0
  %105 = vmatprep.subr.mxu0 0.0
  %106 = vmatpush1.msra.mxu0 0.0
  %107 = vmatprep.subr.mxu0 0.0
  %108 = vmatpush1.msra.mxu0 0.0
  %109 = vmatprep.subr.mxu0 0.0
  %110 = vmatpush1.msra.mxu0 0.0
  %111 = vmatprep.subr.mxu0 0.0
  %112 = vmatpush1.msra.mxu0 0.0
  %113 = vmatprep.subr.mxu0 0.0
  %114 = vmatpush1.msra.mxu0 0.0
  %115 = vmatprep.subr.mxu0 0.0
  %116 = vmatpush1.msra.mxu0 0.0
  %117 = vmatprep.subr.mxu0 0.0
  %118 = vmatpush1.msra.mxu0 0.0
  %119 = vmatprep.subr.mxu0 0.0
  %120 = vmatpush1.msra.mxu0 0.0
  %121 = vmatprep.subr.mxu0 0.0
  %122 = vmatpush1.msra.mxu0 0.0
  %123 = vmatprep.subr.mxu0 0.0
  %124 = vmatpush1.msra.mxu0 0.0
  %125 = vmatprep.subr.mxu0 0.0
  %126 = vmatpush1.msra.mxu0 0.0
  %127 = vmatprep.subr.mxu0 0.0
  %128 = vmatpush1.msra.mxu0 0.0
  %129 = vmatprep.subr.mxu0 0.0
  %130 = vmatpush1.msra.mxu0 0.0
  %131 = vmatprep.subr.mxu0 0.0
  %132 = vmatpush1.msra.mxu0 0.0
  %133 = vmatprep.subr.mxu0 0.0
  %134 = vmatpush1.msra.mxu0 0.0
  %135 = vmatprep.subr.mxu0 0.0
  %136 = vmatpush1.msra.mxu0 0.0
  %137 = vmatprep.subr.mxu0 0.0
  %138 = vmatpush1.msra.mxu0 0.0
  %139 = vmatprep.mubr.f32.mxu0 0.0
  %140 = vmatmul.mubr.f32.gmra.mrb[0].mxu0 %v52
  %v141 = vpop.f32.mrb[0].mxu0
  %v142 = vadd.f32 %v48, %v141
  %v143 = vpop.f32.mrb[0].mxu0
  %144 = vmatprep.mubr.f32.mxu0 0.0
  %145 = vmatmul.mubr.f32.gmra.mrb[0].mxu0 %v55
  %v146 = vpop.f32.mrb[0].mxu0
  %v147 = vadd.f32 %v48, %v146
  %v148 = vpop.f32.mrb[0].mxu0
  %149 = vmatprep.mubr.f32.mxu0 0.0
  %150 = vmatmul.mubr.f32.gmra.mrb[0].mxu0 %v58
  %v151 = vpop.f32.mrb[0].mxu0
  %v152 = vadd.f32 %v48, %v151
  %v153 = vpop.f32.mrb[0].mxu0
  %154 = vmatprep.mubr.f32.mxu0 0.0
  %155 = vmatmul.mubr.f32.gmra.mrb[0].mxu0 %v61
  %v156 = vpop.f32.mrb[0].mxu0
  %v157 = vadd.f32 %v48, %v156
  %v158 = vpop.f32.mrb[0].mxu0
  %159 = vmatprep.mubr.f32.mxu0 0.0
  %160 = vmatmul.mubr.f32.gmra.mrb[0].mxu0 %v64
  %v161 = vpop.f32.mrb[0].mxu0
  %v162 = vadd.f32 %v48, %v161
  %v163 = vpop.f32.mrb[0].mxu0
  %164 = vmatprep.mubr.f32.mxu0 0.0
  %165 = vmatmul.mubr.f32.gmra.mrb[0].mxu0 %v67
  %v166 = vpop.f32.mrb[0].mxu0
  %v167 = vadd.f32 %v48, %v166
  %v168 = vpop.f32.mrb[0].mxu0
  %169 = vmatprep.mubr.f32.mxu0 0.0
  %170 = vmatmul.mubr.f32.gmra.mrb[0].mxu0 %v70
  %v171 = vpop.f32.mrb[0].mxu0
  %v172 = vadd.f32 %v48, %v171
  %v173 = vpop.f32.mrb[0].mxu0
  %174 = vmatprep.mubr.f32.mxu0 0.0
  %175 = vmatmul.mubr.f32.gmra.mrb[0].mxu0 %v73
  %v176 = vpop.f32.mrb[0].mxu0
  %v177 = vadd.f32 %v48, %v176
  %v178 = vpop.f32.mrb[0].mxu0
  %179 = vdwg.mxu0
  %180 = vst [vmem:[#allocation3] sm:$0xff] %v142
  %181 = vst [vmem:[#allocation3 + $0x8] sm:$0xff] %v147
  %182 = vst [vmem:[#allocation3 + $0x10] sm:$0xff] %v152
  %183 = vst [vmem:[#allocation3 + $0x18] sm:$0xff] %v157
  %184 = vst [vmem:[#allocation3 + $0x20] sm:$0xff] %v162
  %185 = vst [vmem:[#allocation3 + $0x28] sm:$0xff] %v167
  %186 = vst [vmem:[#allocation3 + $0x30] sm:$0xff] %v172
  %187 = vst [vmem:[#allocation3 + $0x38] sm:$0xff] %v177
  %v188 = vld [vmem:[%s2] sm:$0xff]
  %v189 = vld [vmem:[%s2 + $0x8] sm:$0xff]
  %v190 = vld [vmem:[%s2 + $0x10] sm:$0xff]
  %v191 = vld [vmem:[%s2 + $0x18] sm:$0xff]
  %v192 = vld [vmem:[#allocation3] sm:$0xff]
  %vm193 = vcmask 261120
  %v195 = vsel %vm193, 0.0, 0
  %197 = vmatprep.subr.mxu0 0.0
  %198 = vmatpush1.msra.mxu0 %v188
  %199 = vmatprep.subr.mxu0 0.0
  %200 = vmatpush1.msra.mxu0 %v189
  %201 = vmatprep.subr.mxu0 0.0
  %202 = vmatpush1.msra.mxu0 %v190
  %203 = vmatprep.subr.mxu0 0.0
  %204 = vmatpush1.msra.mxu0 %v191
  %205 = vmatprep.subr.mxu0 0.0
  %206 = vmatpush1.msra.mxu0 0.0
  %207 = vmatprep.subr.mxu0 0.0
  %208 = vmatpush1.msra.mxu0 0.0
  %209 = vmatprep.subr.mxu0 0.0
  %210 = vmatpush1.msra.mxu0 0.0
  %211 = vmatprep.subr.mxu0 0.0
  %212 = vmatpush1.msra.mxu0 0.0
  %213 = vmatprep.subr.mxu0 0.0
  %214 = vmatpush1.msra.mxu0 0.0
  %215 = vmatprep.subr.mxu0 0.0
  %216 = vmatpush1.msra.mxu0 0.0
  %217 = vmatprep.subr.mxu0 0.0
  %218 = vmatpush1.msra.mxu0 0.0
  %219 = vmatprep.subr.mxu0 0.0
  %220 = vmatpush1.msra.mxu0 0.0
  %221 = vmatprep.subr.mxu0 0.0
  %222 = vmatpush1.msra.mxu0 0.0
  %223 = vmatprep.subr.mxu0 0.0
  %224 = vmatpush1.msra.mxu0 0.0
  %225 = vmatprep.subr.mxu0 0.0
  %226 = vmatpush1.msra.mxu0 0.0
  %227 = vmatprep.subr.mxu0 0.0
  %228 = vmatpush1.msra.mxu0 0.0
  %229 = vmatprep.subr.mxu0 0.0
  %230 = vmatpush1.msra.mxu0 0.0
  %231 = vmatprep.subr.mxu0 0.0
  %232 = vmatpush1.msra.mxu0 0.0
  %233 = vmatprep.subr.mxu0 0.0
  %234 = vmatpush1.msra.mxu0 0.0
  %235 = vmatprep.subr.mxu0 0.0
  %236 = vmatpush1.msra.mxu0 0.0
  %237 = vmatprep.subr.mxu0 0.0
  %238 = vmatpush1.msra.mxu0 0.0
  %239 = vmatprep.subr.mxu0 0.0
  %240 = vmatpush1.msra.mxu0 0.0
  %241 = vmatprep.subr.mxu0 0.0
  %242 = vmatpush1.msra.mxu0 0.0
  %243 = vmatprep.subr.mxu0 0.0
  %244 = vmatpush1.msra.mxu0 0.0
  %245 = vmatprep.subr.mxu0 0.0
  %246 = vmatpush1.msra.mxu0 0.0
  %247 = vmatprep.subr.mxu0 0.0
  %248 = vmatpush1.msra.mxu0 0.0
  %249 = vmatprep.subr.mxu0 0.0
  %250 = vmatpush1.msra.mxu0 0.0
  %251 = vmatprep.subr.mxu0 0.0
  %252 = vmatpush1.msra.mxu0 0.0
  %253 = vmatprep.subr.mxu0 0.0
  %254 = vmatpush1.msra.mxu0 0.0
  %255 = vmatprep.subr.mxu0 0.0
  %256 = vmatpush1.msra.mxu0 0.0
  %257 = vmatprep.subr.mxu0 0.0
  %258 = vmatpush1.msra.mxu0 0.0
  %259 = vmatprep.subr.mxu0 0.0
  %260 = vmatpush1.msra.mxu0 0.0
  %261 = vmatprep.mubr.f32.mxu0 0.0
  %262 = vmatmul.mubr.f32.gmra.mrb[0].mxu0 %v195
  %v263 = vpop.f32.mrb[0].mxu0
  %v264 = vadd.f32 0.0, %v263
  %v265 = vpop.f32.mrb[0].mxu0
  %266 = vdwg.mxu0
  %v267 = vadd.f32 %v192, %v264
  %v268 = vxor.u32 %v267, 2147483648
  %v269 = vmul.f32 %v268, 1.442695
  %v270 = vpow.pop %v269
  %v271 = vadd.f32 %v270, 1.0
  %v272 = vrcp.pop %v271
  %v273 = vmul.f32 1.0, %v272
  %v274 = vtanh.pop %v267
  %v275 = vsel %vm32, %v274, %v273
  %v276 = vmul.f32 %v275, 0.0
  %278 = vrot.lane.b32.xlu0 %v275, 64
  %v279 = vpop.permute.xlu0 %278
  %v281 = vmul.f32 %v275, %v279
  %283 = vrot.lane.b32.xlu0 %v281, 32
  %v284 = vpop.permute.xlu0 %283
  %v286 = vadd.f32 %v276, %v284
  %v287 = vtanh.pop %v286
  %289 = vrot.lane.b32.xlu0 %v287, 64
  %v290 = vpop.permute.xlu0 %289
  %v292 = vmul.f32 %v275, %v290
  %294 = vrot.lane.b32.xlu0 %v292, 32
  %v295 = vpop.permute.xlu0 %294
  %297 = vst.msk [vmem:[#allocation2] sm:$0xff] %vm193, %v295
  %v298 = vld [vmem:[#allocation3 + $0x8] sm:$0xff]
  %v299 = vsel %vm193, %v295, 0
  %301 = vmatprep.subr.mxu0 0.0
  %302 = vmatpush1.msra.mxu0 %v188
  %303 = vmatprep.subr.mxu0 0.0
  %304 = vmatpush1.msra.mxu0 %v189
  %305 = vmatprep.subr.mxu0 0.0
  %306 = vmatpush1.msra.mxu0 %v190
  %307 = vmatprep.subr.mxu0 0.0
  %308 = vmatpush1.msra.mxu0 %v191
  %309 = vmatprep.subr.mxu0 0.0
  %310 = vmatpush1.msra.mxu0 0.0
  %311 = vmatprep.subr.mxu0 0.0
  %312 = vmatpush1.msra.mxu0 0.0
  %313 = vmatprep.subr.mxu0 0.0
  %314 = vmatpush1.msra.mxu0 0.0
  %315 = vmatprep.subr.mxu0 0.0
  %316 = vmatpush1.msra.mxu0 0.0
  %317 = vmatprep.subr.mxu0 0.0
  %318 = vmatpush1.msra.mxu0 0.0
  %319 = vmatprep.subr.mxu0 0.0
  %320 = vmatpush1.msra.mxu0 0.0
  %321 = vmatprep.subr.mxu0 0.0
  %322 = vmatpush1.msra.mxu0 0.0
  %323 = vmatprep.subr.mxu0 0.0
  %324 = vmatpush1.msra.mxu0 0.0
  %325 = vmatprep.subr.mxu0 0.0
  %326 = vmatpush1.msra.mxu0 0.0
  %327 = vmatprep.subr.mxu0 0.0
  %328 = vmatpush1.msra.mxu0 0.0
  %329 = vmatprep.subr.mxu0 0.0
  %330 = vmatpush1.msra.mxu0 0.0
  %331 = vmatprep.subr.mxu0 0.0
  %332 = vmatpush1.msra.mxu0 0.0
  %333 = vmatprep.subr.mxu0 0.0
  %334 = vmatpush1.msra.mxu0 0.0
  %335 = vmatprep.subr.mxu0 0.0
  %336 = vmatpush1.msra.mxu0 0.0
  %337 = vmatprep.subr.mxu0 0.0
  %338 = vmatpush1.msra.mxu0 0.0
  %339 = vmatprep.subr.mxu0 0.0
  %340 = vmatpush1.msra.mxu0 0.0
  %341 = vmatprep.subr.mxu0 0.0
  %342 = vmatpush1.msra.mxu0 0.0
  %343 = vmatprep.subr.mxu0 0.0
  %344 = vmatpush1.msra.mxu0 0.0
  %345 = vmatprep.subr.mxu0 0.0
  %346 = vmatpush1.msra.mxu0 0.0
  %347 = vmatprep.subr.mxu0 0.0
  %348 = vmatpush1.msra.mxu0 0.0
  %349 = vmatprep.subr.mxu0 0.0
  %350 = vmatpush1.msra.mxu0 0.0
  %351 = vmatprep.subr.mxu0 0.0
  %352 = vmatpush1.msra.mxu0 0.0
  %353 = vmatprep.subr.mxu0 0.0
  %354 = vmatpush1.msra.mxu0 0.0
  %355 = vmatprep.subr.mxu0 0.0
  %356 = vmatpush1.msra.mxu0 0.0
  %357 = vmatprep.subr.mxu0 0.0
  %358 = vmatpush1.msra.mxu0 0.0
  %359 = vmatprep.subr.mxu0 0.0
  %360 = vmatpush1.msra.mxu0 0.0
  %361 = vmatprep.subr.mxu0 0.0
  %362 = vmatpush1.msra.mxu0 0.0
  %363 = vmatprep.subr.mxu0 0.0
  %364 = vmatpush1.msra.mxu0 0.0
  %365 = vmatprep.mubr.f32.mxu0 0.0
  %366 = vmatmul.mubr.f32.gmra.mrb[0].mxu0 %v299
  %v367 = vpop.f32.mrb[0].mxu0
  %v368 = vadd.f32 0.0, %v367
  %v369 = vpop.f32.mrb[0].mxu0
  %370 = vdwg.mxu0
  %v371 = vadd.f32 %v298, %v368
  %v372 = vxor.u32 %v371, 2147483648
  %v373 = vmul.f32 %v372, 1.442695
  %v374 = vpow.pop %v373
  %v375 = vadd.f32 %v374, 1.0
  %v376 = vrcp.pop %v375
  %v377 = vmul.f32 1.0, %v376
  %v378 = vtanh.pop %v371
  %v379 = vsel %vm32, %v378, %v377
  %v380 = vmul.f32 %v379, %v286
  %382 = vrot.lane.b32.xlu0 %v379, 64
  %v383 = vpop.permute.xlu0 %382
  %v385 = vmul.f32 %v379, %v383
  %387 = vrot.lane.b32.xlu0 %v385, 32
  %v388 = vpop.permute.xlu0 %387
  %v390 = vadd.f32 %v380, %v388
  %v391 = vtanh.pop %v390
  %393 = vrot.lane.b32.xlu0 %v391, 64
  %v394 = vpop.permute.xlu0 %393
  %v396 = vmul.f32 %v379, %v394
  %398 = vrot.lane.b32.xlu0 %v396, 32
  %v399 = vpop.permute.xlu0 %398
  %401 = vst.msk [vmem:[#allocation2 + $0x8] sm:$0xff] %vm193, %v399
  %v402 = vld [vmem:[#allocation3 + $0x10] sm:$0xff]
  %v403 = vsel %vm193, %v399, 0
  %405 = vmatprep.subr.mxu0 0.0
  %406 = vmatpush1.msra.mxu0 %v188
  %407 = vmatprep.subr.mxu0 0.0
  %408 = vmatpush1.msra.mxu0 %v189
  %409 = vmatprep.subr.mxu0 0.0
  %410 = vmatpush1.msra.mxu0 %v190
  %411 = vmatprep.subr.mxu0 0.0
  %412 = vmatpush1.msra.mxu0 %v191
  %413 = vmatprep.subr.mxu0 0.0
  %414 = vmatpush1.msra.mxu0 0.0
  %415 = vmatprep.subr.mxu0 0.0
  %416 = vmatpush1.msra.mxu0 0.0
  %417 = vmatprep.subr.mxu0 0.0
  %418 = vmatpush1.msra.mxu0 0.0
  %419 = vmatprep.subr.mxu0 0.0
  %420 = vmatpush1.msra.mxu0 0.0
  %421 = vmatprep.subr.mxu0 0.0
  %422 = vmatpush1.msra.mxu0 0.0
  %423 = vmatprep.subr.mxu0 0.0
  %424 = vmatpush1.msra.mxu0 0.0
  %425 = vmatprep.subr.mxu0 0.0
  %426 = vmatpush1.msra.mxu0 0.0
  %427 = vmatprep.subr.mxu0 0.0
  %428 = vmatpush1.msra.mxu0 0.0
  %429 = vmatprep.subr.mxu0 0.0
  %430 = vmatpush1.msra.mxu0 0.0
  %431 = vmatprep.subr.mxu0 0.0
  %432 = vmatpush1.msra.mxu0 0.0
  %433 = vmatprep.subr.mxu0 0.0
  %434 = vmatpush1.msra.mxu0 0.0
  %435 = vmatprep.subr.mxu0 0.0
  %436 = vmatpush1.msra.mxu0 0.0
  %437 = vmatprep.subr.mxu0 0.0
  %438 = vmatpush1.msra.mxu0 0.0
  %439 = vmatprep.subr.mxu0 0.0
  %440 = vmatpush1.msra.mxu0 0.0
  %441 = vmatprep.subr.mxu0 0.0
  %442 = vmatpush1.msra.mxu0 0.0
  %443 = vmatprep.subr.mxu0 0.0
  %444 = vmatpush1.msra.mxu0 0.0
  %445 = vmatprep.subr.mxu0 0.0
  %446 = vmatpush1.msra.mxu0 0.0
  %447 = vmatprep.subr.mxu0 0.0
  %448 = vmatpush1.msra.mxu0 0.0
  %449 = vmatprep.subr.mxu0 0.0
  %450 = vmatpush1.msra.mxu0 0.0
  %451 = vmatprep.subr.mxu0 0.0
  %452 = vmatpush1.msra.mxu0 0.0
  %453 = vmatprep.subr.mxu0 0.0
  %454 = vmatpush1.msra.mxu0 0.0
  %455 = vmatprep.subr.mxu0 0.0
  %456 = vmatpush1.msra.mxu0 0.0
  %457 = vmatprep.subr.mxu0 0.0
  %458 = vmatpush1.msra.mxu0 0.0
  %459 = vmatprep.subr.mxu0 0.0
  %460 = vmatpush1.msra.mxu0 0.0
  %461 = vmatprep.subr.mxu0 0.0
  %462 = vmatpush1.msra.mxu0 0.0
  %463 = vmatprep.subr.mxu0 0.0
  %464 = vmatpush1.msra.mxu0 0.0
  %465 = vmatprep.subr.mxu0 0.0
  %466 = vmatpush1.msra.mxu0 0.0
  %467 = vmatprep.subr.mxu0 0.0
  %468 = vmatpush1.msra.mxu0 0.0
  %469 = vmatprep.mubr.f32.mxu0 0.0
  %470 = vmatmul.mubr.f32.gmra.mrb[0].mxu0 %v403
  %v471 = vpop.f32.mrb[0].mxu0
  %v472 = vadd.f32 0.0, %v471
  %v473 = vpop.f32.mrb[0].mxu0
  %474 = vdwg.mxu0
  %v475 = vadd.f32 %v402, %v472
  %v476 = vxor.u32 %v475, 2147483648
  %v477 = vmul.f32 %v476, 1.442695
  %v478 = vpow.pop %v477
  %v479 = vadd.f32 %v478, 1.0
  %v480 = vrcp.pop %v479
  %v481 = vmul.f32 1.0, %v480
  %v482 = vtanh.pop %v475
  %v483 = vsel %vm32, %v482, %v481
  %v484 = vmul.f32 %v483, %v390
  %486 = vrot.lane.b32.xlu0 %v483, 64
  %v487 = vpop.permute.xlu0 %486
  %v489 = vmul.f32 %v483, %v487
  %491 = vrot.lane.b32.xlu0 %v489, 32
  %v492 = vpop.permute.xlu0 %491
  %v494 = vadd.f32 %v484, %v492
  %v495 = vtanh.pop %v494
  %497 = vrot.lane.b32.xlu0 %v495, 64
  %v498 = vpop.permute.xlu0 %497
  %v500 = vmul.f32 %v483, %v498
  %502 = vrot.lane.b32.xlu0 %v500, 32
  %v503 = vpop.permute.xlu0 %502
  %505 = vst.msk [vmem:[#allocation2 + $0x10] sm:$0xff] %vm193, %v503
  %v506 = vld [vmem:[#allocation3 + $0x18] sm:$0xff]
  %v507 = vsel %vm193, %v503, 0
  %509 = vmatprep.subr.mxu0 0.0
  %510 = vmatpush1.msra.mxu0 %v188
  %511 = vmatprep.subr.mxu0 0.0
  %512 = vmatpush1.msra.mxu0 %v189
  %513 = vmatprep.subr.mxu0 0.0
  %514 = vmatpush1.msra.mxu0 %v190
  %515 = vmatprep.subr.mxu0 0.0
  %516 = vmatpush1.msra.mxu0 %v191
  %517 = vmatprep.subr.mxu0 0.0
  %518 = vmatpush1.msra.mxu0 0.0
  %519 = vmatprep.subr.mxu0 0.0
  %520 = vmatpush1.msra.mxu0 0.0
  %521 = vmatprep.subr.mxu0 0.0
  %522 = vmatpush1.msra.mxu0 0.0
  %523 = vmatprep.subr.mxu0 0.0
  %524 = vmatpush1.msra.mxu0 0.0
  %525 = vmatprep.subr.mxu0 0.0
  %526 = vmatpush1.msra.mxu0 0.0
  %527 = vmatprep.subr.mxu0 0.0
  %528 = vmatpush1.msra.mxu0 0.0
  %529 = vmatprep.subr.mxu0 0.0
  %530 = vmatpush1.msra.mxu0 0.0
  %531 = vmatprep.subr.mxu0 0.0
  %532 = vmatpush1.msra.mxu0 0.0
  %533 = vmatprep.subr.mxu0 0.0
  %534 = vmatpush1.msra.mxu0 0.0
  %535 = vmatprep.subr.mxu0 0.0
  %536 = vmatpush1.msra.mxu0 0.0
  %537 = vmatprep.subr.mxu0 0.0
  %538 = vmatpush1.msra.mxu0 0.0
  %539 = vmatprep.subr.mxu0 0.0
  %540 = vmatpush1.msra.mxu0 0.0
  %541 = vmatprep.subr.mxu0 0.0
  %542 = vmatpush1.msra.mxu0 0.0
  %543 = vmatprep.subr.mxu0 0.0
  %544 = vmatpush1.msra.mxu0 0.0
  %545 = vmatprep.subr.mxu0 0.0
  %546 = vmatpush1.msra.mxu0 0.0
  %547 = vmatprep.subr.mxu0 0.0
  %548 = vmatpush1.msra.mxu0 0.0
  %549 = vmatprep.subr.mxu0 0.0
  %550 = vmatpush1.msra.mxu0 0.0
  %551 = vmatprep.subr.mxu0 0.0
  %552 = vmatpush1.msra.mxu0 0.0
  %553 = vmatprep.subr.mxu0 0.0
  %554 = vmatpush1.msra.mxu0 0.0
  %555 = vmatprep.subr.mxu0 0.0
  %556 = vmatpush1.msra.mxu0 0.0
  %557 = vmatprep.subr.mxu0 0.0
  %558 = vmatpush1.msra.mxu0 0.0
  %559 = vmatprep.subr.mxu0 0.0
  %560 = vmatpush1.msra.mxu0 0.0
  %561 = vmatprep.subr.mxu0 0.0
  %562 = vmatpush1.msra.mxu0 0.0
  %563 = vmatprep.subr.mxu0 0.0
  %564 = vmatpush1.msra.mxu0 0.0
  %565 = vmatprep.subr.mxu0 0.0
  %566 = vmatpush1.msra.mxu0 0.0
  %567 = vmatprep.subr.mxu0 0.0
  %568 = vmatpush1.msra.mxu0 0.0
  %569 = vmatprep.subr.mxu0 0.0
  %570 = vmatpush1.msra.mxu0 0.0
  %571 = vmatprep.subr.mxu0 0.0
  %572 = vmatpush1.msra.mxu0 0.0
  %573 = vmatprep.mubr.f32.mxu0 0.0
  %574 = vmatmul.mubr.f32.gmra.mrb[0].mxu0 %v507
  %v575 = vpop.f32.mrb[0].mxu0
  %v576 = vadd.f32 0.0, %v575
  %v577 = vpop.f32.mrb[0].mxu0
  %578 = vdwg.mxu0
  %v579 = vadd.f32 %v506, %v576
  %v580 = vxor.u32 %v579, 2147483648
  %v581 = vmul.f32 %v580, 1.442695
  %v582 = vpow.pop %v581
  %v583 = vadd.f32 %v582, 1.0
  %v584 = vrcp.pop %v583
  %v585 = vmul.f32 1.0, %v584
  %v586 = vtanh.pop %v579
  %v587 = vsel %vm32, %v586, %v585
  %v588 = vmul.f32 %v587, %v494
  %590 = vrot.lane.b32.xlu0 %v587, 64
  %v591 = vpop.permute.xlu0 %590
  %v593 = vmul.f32 %v587, %v591
  %595 = vrot.lane.b32.xlu0 %v593, 32
  %v596 = vpop.permute.xlu0 %595
  %v598 = vadd.f32 %v588, %v596
  %v599 = vtanh.pop %v598
  %601 = vrot.lane.b32.xlu0 %v599, 64
  %v602 = vpop.permute.xlu0 %601
  %v604 = vmul.f32 %v587, %v602
  %606 = vrot.lane.b32.xlu0 %v604, 32
  %v607 = vpop.permute.xlu0 %606
  %609 = vst.msk [vmem:[#allocation2 + $0x18] sm:$0xff] %vm193, %v607
  %v610 = vld [vmem:[#allocation3 + $0x20] sm:$0xff]
  %v611 = vsel %vm193, %v607, 0
  %613 = vmatprep.subr.mxu0 0.0
  %614 = vmatpush1.msra.mxu0 %v188
  %615 = vmatprep.subr.mxu0 0.0
  %616 = vmatpush1.msra.mxu0 %v189
  %617 = vmatprep.subr.mxu0 0.0
  %618 = vmatpush1.msra.mxu0 %v190
  %619 = vmatprep.subr.mxu0 0.0
  %620 = vmatpush1.msra.mxu0 %v191
  %621 = vmatprep.subr.mxu0 0.0
  %622 = vmatpush1.msra.mxu0 0.0
  %623 = vmatprep.subr.mxu0 0.0
  %624 = vmatpush1.msra.mxu0 0.0
  %625 = vmatprep.subr.mxu0 0.0
  %626 = vmatpush1.msra.mxu0 0.0
  %627 = vmatprep.subr.mxu0 0.0
  %628 = vmatpush1.msra.mxu0 0.0
  %629 = vmatprep.subr.mxu0 0.0
  %630 = vmatpush1.msra.mxu0 0.0
  %631 = vmatprep.subr.mxu0 0.0
  %632 = vmatpush1.msra.mxu0 0.0
  %633 = vmatprep.subr.mxu0 0.0
  %634 = vmatpush1.msra.mxu0 0.0
  %635 = vmatprep.subr.mxu0 0.0
  %636 = vmatpush1.msra.mxu0 0.0
  %637 = vmatprep.subr.mxu0 0.0
  %638 = vmatpush1.msra.mxu0 0.0
  %639 = vmatprep.subr.mxu0 0.0
  %640 = vmatpush1.msra.mxu0 0.0
  %641 = vmatprep.subr.mxu0 0.0
  %642 = vmatpush1.msra.mxu0 0.0
  %643 = vmatprep.subr.mxu0 0.0
  %644 = vmatpush1.msra.mxu0 0.0
  %645 = vmatprep.subr.mxu0 0.0
  %646 = vmatpush1.msra.mxu0 0.0
  %647 = vmatprep.subr.mxu0 0.0
  %648 = vmatpush1.msra.mxu0 0.0
  %649 = vmatprep.subr.mxu0 0.0
  %650 = vmatpush1.msra.mxu0 0.0
  %651 = vmatprep.subr.mxu0 0.0
  %652 = vmatpush1.msra.mxu0 0.0
  %653 = vmatprep.subr.mxu0 0.0
  %654 = vmatpush1.msra.mxu0 0.0
  %655 = vmatprep.subr.mxu0 0.0
  %656 = vmatpush1.msra.mxu0 0.0
  %657 = vmatprep.subr.mxu0 0.0
  %658 = vmatpush1.msra.mxu0 0.0
  %659 = vmatprep.subr.mxu0 0.0
  %660 = vmatpush1.msra.mxu0 0.0
  %661 = vmatprep.subr.mxu0 0.0
  %662 = vmatpush1.msra.mxu0 0.0
  %663 = vmatprep.subr.mxu0 0.0
  %664 = vmatpush1.msra.mxu0 0.0
  %665 = vmatprep.subr.mxu0 0.0
  %666 = vmatpush1.msra.mxu0 0.0
  %667 = vmatprep.subr.mxu0 0.0
  %668 = vmatpush1.msra.mxu0 0.0
  %669 = vmatprep.subr.mxu0 0.0
  %670 = vmatpush1.msra.mxu0 0.0
  %671 = vmatprep.subr.mxu0 0.0
  %672 = vmatpush1.msra.mxu0 0.0
  %673 = vmatprep.subr.mxu0 0.0
  %674 = vmatpush1.msra.mxu0 0.0
  %675 = vmatprep.subr.mxu0 0.0
  %676 = vmatpush1.msra.mxu0 0.0
  %677 = vmatprep.mubr.f32.mxu0 0.0
  %678 = vmatmul.mubr.f32.gmra.mrb[0].mxu0 %v611
  %v679 = vpop.f32.mrb[0].mxu0
  %v680 = vadd.f32 0.0, %v679
  %v681 = vpop.f32.mrb[0].mxu0
  %682 = vdwg.mxu0
  %v683 = vadd.f32 %v610, %v680
  %v684 = vxor.u32 %v683, 2147483648
  %v685 = vmul.f32 %v684, 1.442695
  %v686 = vpow.pop %v685
  %v687 = vadd.f32 %v686, 1.0
  %v688 = vrcp.pop %v687
  %v689 = vmul.f32 1.0, %v688
  %v690 = vtanh.pop %v683
  %v691 = vsel %vm32, %v690, %v689
  %v692 = vmul.f32 %v691, %v598
  %694 = vrot.lane.b32.xlu0 %v691, 64
  %v695 = vpop.permute.xlu0 %694
  %v697 = vmul.f32 %v691, %v695
  %699 = vrot.lane.b32.xlu0 %v697, 32
  %v700 = vpop.permute.xlu0 %699
  %v702 = vadd.f32 %v692, %v700
  %v703 = vtanh.pop %v702
  %705 = vrot.lane.b32.xlu0 %v703, 64
  %v706 = vpop.permute.xlu0 %705
  %v708 = vmul.f32 %v691, %v706
  %710 = vrot.lane.b32.xlu0 %v708, 32
  %v711 = vpop.permute.xlu0 %710
  %713 = vst.msk [vmem:[#allocation2 + $0x20] sm:$0xff] %vm193, %v711
  %v714 = vld [vmem:[#allocation3 + $0x28] sm:$0xff]
  %v715 = vsel %vm193, %v711, 0
  %717 = vmatprep.subr.mxu0 0.0
  %718 = vmatpush1.msra.mxu0 %v188
  %719 = vmatprep.subr.mxu0 0.0
  %720 = vmatpush1.msra.mxu0 %v189
  %721 = vmatprep.subr.mxu0 0.0
  %722 = vmatpush1.msra.mxu0 %v190
  %723 = vmatprep.subr.mxu0 0.0
  %724 = vmatpush1.msra.mxu0 %v191
  %725 = vmatprep.subr.mxu0 0.0
  %726 = vmatpush1.msra.mxu0 0.0
  %727 = vmatprep.subr.mxu0 0.0
  %728 = vmatpush1.msra.mxu0 0.0
  %729 = vmatprep.subr.mxu0 0.0
  %730 = vmatpush1.msra.mxu0 0.0
  %731 = vmatprep.subr.mxu0 0.0
  %732 = vmatpush1.msra.mxu0 0.0
  %733 = vmatprep.subr.mxu0 0.0
  %734 = vmatpush1.msra.mxu0 0.0
  %735 = vmatprep.subr.mxu0 0.0
  %736 = vmatpush1.msra.mxu0 0.0
  %737 = vmatprep.subr.mxu0 0.0
  %738 = vmatpush1.msra.mxu0 0.0
  %739 = vmatprep.subr.mxu0 0.0
  %740 = vmatpush1.msra.mxu0 0.0
  %741 = vmatprep.subr.mxu0 0.0
  %742 = vmatpush1.msra.mxu0 0.0
  %743 = vmatprep.subr.mxu0 0.0
  %744 = vmatpush1.msra.mxu0 0.0
  %745 = vmatprep.subr.mxu0 0.0
  %746 = vmatpush1.msra.mxu0 0.0
  %747 = vmatprep.subr.mxu0 0.0
  %748 = vmatpush1.msra.mxu0 0.0
  %749 = vmatprep.subr.mxu0 0.0
  %750 = vmatpush1.msra.mxu0 0.0
  %751 = vmatprep.subr.mxu0 0.0
  %752 = vmatpush1.msra.mxu0 0.0
  %753 = vmatprep.subr.mxu0 0.0
  %754 = vmatpush1.msra.mxu0 0.0
  %755 = vmatprep.subr.mxu0 0.0
  %756 = vmatpush1.msra.mxu0 0.0
  %757 = vmatprep.subr.mxu0 0.0
  %758 = vmatpush1.msra.mxu0 0.0
  %759 = vmatprep.subr.mxu0 0.0
  %760 = vmatpush1.msra.mxu0 0.0
  %761 = vmatprep.subr.mxu0 0.0
  %762 = vmatpush1.msra.mxu0 0.0
  %763 = vmatprep.subr.mxu0 0.0
  %764 = vmatpush1.msra.mxu0 0.0
  %765 = vmatprep.subr.mxu0 0.0
  %766 = vmatpush1.msra.mxu0 0.0
  %767 = vmatprep.subr.mxu0 0.0
  %768 = vmatpush1.msra.mxu0 0.0
  %769 = vmatprep.subr.mxu0 0.0
  %770 = vmatpush1.msra.mxu0 0.0
  %771 = vmatprep.subr.mxu0 0.0
  %772 = vmatpush1.msra.mxu0 0.0
  %773 = vmatprep.subr.mxu0 0.0
  %774 = vmatpush1.msra.mxu0 0.0
  %775 = vmatprep.subr.mxu0 0.0
  %776 = vmatpush1.msra.mxu0 0.0
  %777 = vmatprep.subr.mxu0 0.0
  %778 = vmatpush1.msra.mxu0 0.0
  %779 = vmatprep.subr.mxu0 0.0
  %780 = vmatpush1.msra.mxu0 0.0
  %781 = vmatprep.mubr.f32.mxu0 0.0
  %782 = vmatmul.mubr.f32.gmra.mrb[0].mxu0 %v715
  %v783 = vpop.f32.mrb[0].mxu0
  %v784 = vadd.f32 0.0, %v783
  %v785 = vpop.f32.mrb[0].mxu0
  %786 = vdwg.mxu0
  %v787 = vadd.f32 %v714, %v784
  %v788 = vxor.u32 %v787, 2147483648
  %v789 = vmul.f32 %v788, 1.442695
  %v790 = vpow.pop %v789
  %v791 = vadd.f32 %v790, 1.0
  %v792 = vrcp.pop %v791
  %v793 = vmul.f32 1.0, %v792
  %v794 = vtanh.pop %v787
  %v795 = vsel %vm32, %v794, %v793
  %v796 = vmul.f32 %v795, %v702
  %798 = vrot.lane.b32.xlu0 %v795, 64
  %v799 = vpop.permute.xlu0 %798
  %v801 = vmul.f32 %v795, %v799
  %803 = vrot.lane.b32.xlu0 %v801, 32
  %v804 = vpop.permute.xlu0 %803
  %v806 = vadd.f32 %v796, %v804
  %v807 = vtanh.pop %v806
  %809 = vrot.lane.b32.xlu0 %v807, 64
  %v810 = vpop.permute.xlu0 %809
  %v812 = vmul.f32 %v795, %v810
  %814 = vrot.lane.b32.xlu0 %v812, 32
  %v815 = vpop.permute.xlu0 %814
  %817 = vst.msk [vmem:[#allocation2 + $0x28] sm:$0xff] %vm193, %v815
  %v818 = vld [vmem:[#allocation3 + $0x30] sm:$0xff]
  %v819 = vsel %vm193, %v815, 0
  %821 = vmatprep.subr.mxu0 0.0
  %822 = vmatpush1.msra.mxu0 %v188
  %823 = vmatprep.subr.mxu0 0.0
  %824 = vmatpush1.msra.mxu0 %v189
  %825 = vmatprep.subr.mxu0 0.0
  %826 = vmatpush1.msra.mxu0 %v190
  %827 = vmatprep.subr.mxu0 0.0
  %828 = vmatpush1.msra.mxu0 %v191
  %829 = vmatprep.subr.mxu0 0.0
  %830 = vmatpush1.msra.mxu0 0.0
  %831 = vmatprep.subr.mxu0 0.0
  %832 = vmatpush1.msra.mxu0 0.0
  %833 = vmatprep.subr.mxu0 0.0
  %834 = vmatpush1.msra.mxu0 0.0
  %835 = vmatprep.subr.mxu0 0.0
  %836 = vmatpush1.msra.mxu0 0.0
  %837 = vmatprep.subr.mxu0 0.0
  %838 = vmatpush1.msra.mxu0 0.0
  %839 = vmatprep.subr.mxu0 0.0
  %840 = vmatpush1.msra.mxu0 0.0
  %841 = vmatprep.subr.mxu0 0.0
  %842 = vmatpush1.msra.mxu0 0.0
  %843 = vmatprep.subr.mxu0 0.0
  %844 = vmatpush1.msra.mxu0 0.0
  %845 = vmatprep.subr.mxu0 0.0
  %846 = vmatpush1.msra.mxu0 0.0
  %847 = vmatprep.subr.mxu0 0.0
  %848 = vmatpush1.msra.mxu0 0.0
  %849 = vmatprep.subr.mxu0 0.0
  %850 = vmatpush1.msra.mxu0 0.0
  %851 = vmatprep.subr.mxu0 0.0
  %852 = vmatpush1.msra.mxu0 0.0
  %853 = vmatprep.subr.mxu0 0.0
  %854 = vmatpush1.msra.mxu0 0.0
  %855 = vmatprep.subr.mxu0 0.0
  %856 = vmatpush1.msra.mxu0 0.0
  %857 = vmatprep.subr.mxu0 0.0
  %858 = vmatpush1.msra.mxu0 0.0
  %859 = vmatprep.subr.mxu0 0.0
  %860 = vmatpush1.msra.mxu0 0.0
  %861 = vmatprep.subr.mxu0 0.0
  %862 = vmatpush1.msra.mxu0 0.0
  %863 = vmatprep.subr.mxu0 0.0
  %864 = vmatpush1.msra.mxu0 0.0
  %865 = vmatprep.subr.mxu0 0.0
  %866 = vmatpush1.msra.mxu0 0.0
  %867 = vmatprep.subr.mxu0 0.0
  %868 = vmatpush1.msra.mxu0 0.0
  %869 = vmatprep.subr.mxu0 0.0
  %870 = vmatpush1.msra.mxu0 0.0
  %871 = vmatprep.subr.mxu0 0.0
  %872 = vmatpush1.msra.mxu0 0.0
  %873 = vmatprep.subr.mxu0 0.0
  %874 = vmatpush1.msra.mxu0 0.0
  %875 = vmatprep.subr.mxu0 0.0
  %876 = vmatpush1.msra.mxu0 0.0
  %877 = vmatprep.subr.mxu0 0.0
  %878 = vmatpush1.msra.mxu0 0.0
  %879 = vmatprep.subr.mxu0 0.0
  %880 = vmatpush1.msra.mxu0 0.0
  %881 = vmatprep.subr.mxu0 0.0
  %882 = vmatpush1.msra.mxu0 0.0
  %883 = vmatprep.subr.mxu0 0.0
  %884 = vmatpush1.msra.mxu0 0.0
  %885 = vmatprep.mubr.f32.mxu0 0.0
  %886 = vmatmul.mubr.f32.gmra.mrb[0].mxu0 %v819
  %v887 = vpop.f32.mrb[0].mxu0
  %v888 = vadd.f32 0.0, %v887
  %v889 = vpop.f32.mrb[0].mxu0
  %890 = vdwg.mxu0
  %v891 = vadd.f32 %v818, %v888
  %v892 = vxor.u32 %v891, 2147483648
  %v893 = vmul.f32 %v892, 1.442695
  %v894 = vpow.pop %v893
  %v895 = vadd.f32 %v894, 1.0
  %v896 = vrcp.pop %v895
  %v897 = vmul.f32 1.0, %v896
  %v898 = vtanh.pop %v891
  %v899 = vsel %vm32, %v898, %v897
  %v900 = vmul.f32 %v899, %v806
  %902 = vrot.lane.b32.xlu0 %v899, 64
  %v903 = vpop.permute.xlu0 %902
  %v905 = vmul.f32 %v899, %v903
  %907 = vrot.lane.b32.xlu0 %v905, 32
  %v908 = vpop.permute.xlu0 %907
  %v910 = vadd.f32 %v900, %v908
  %v911 = vtanh.pop %v910
  %913 = vrot.lane.b32.xlu0 %v911, 64
  %v914 = vpop.permute.xlu0 %913
  %v916 = vmul.f32 %v899, %v914
  %918 = vrot.lane.b32.xlu0 %v916, 32
  %v919 = vpop.permute.xlu0 %918
  %921 = vst.msk [vmem:[#allocation2 + $0x30] sm:$0xff] %vm193, %v919
  %v922 = vld [vmem:[#allocation3 + $0x38] sm:$0xff]
  %v923 = vsel %vm193, %v919, 0
  %925 = vmatprep.subr.mxu0 0.0
  %926 = vmatpush1.msra.mxu0 %v188
  %927 = vmatprep.subr.mxu0 0.0
  %928 = vmatpush1.msra.mxu0 %v189
  %929 = vmatprep.subr.mxu0 0.0
  %930 = vmatpush1.msra.mxu0 %v190
  %931 = vmatprep.subr.mxu0 0.0
  %932 = vmatpush1.msra.mxu0 %v191
  %933 = vmatprep.subr.mxu0 0.0
  %934 = vmatpush1.msra.mxu0 0.0
  %935 = vmatprep.subr.mxu0 0.0
  %936 = vmatpush1.msra.mxu0 0.0
  %937 = vmatprep.subr.mxu0 0.0
  %938 = vmatpush1.msra.mxu0 0.0
  %939 = vmatprep.subr.mxu0 0.0
  %940 = vmatpush1.msra.mxu0 0.0
  %941 = vmatprep.subr.mxu0 0.0
  %942 = vmatpush1.msra.mxu0 0.0
  %943 = vmatprep.subr.mxu0 0.0
  %944 = vmatpush1.msra.mxu0 0.0
  %945 = vmatprep.subr.mxu0 0.0
  %946 = vmatpush1.msra.mxu0 0.0
  %947 = vmatprep.subr.mxu0 0.0
  %948 = vmatpush1.msra.mxu0 0.0
  %949 = vmatprep.subr.mxu0 0.0
  %950 = vmatpush1.msra.mxu0 0.0
  %951 = vmatprep.subr.mxu0 0.0
  %952 = vmatpush1.msra.mxu0 0.0
  %953 = vmatprep.subr.mxu0 0.0
  %954 = vmatpush1.msra.mxu0 0.0
  %955 = vmatprep.subr.mxu0 0.0
  %956 = vmatpush1.msra.mxu0 0.0
  %957 = vmatprep.subr.mxu0 0.0
  %958 = vmatpush1.msra.mxu0 0.0
  %959 = vmatprep.subr.mxu0 0.0
  %960 = vmatpush1.msra.mxu0 0.0
  %961 = vmatprep.subr.mxu0 0.0
  %962 = vmatpush1.msra.mxu0 0.0
  %963 = vmatprep.subr.mxu0 0.0
  %964 = vmatpush1.msra.mxu0 0.0
  %965 = vmatprep.subr.mxu0 0.0
  %966 = vmatpush1.msra.mxu0 0.0
  %967 = vmatprep.subr.mxu0 0.0
  %968 = vmatpush1.msra.mxu0 0.0
  %969 = vmatprep.subr.mxu0 0.0
  %970 = vmatpush1.msra.mxu0 0.0
  %971 = vmatprep.subr.mxu0 0.0
  %972 = vmatpush1.msra.mxu0 0.0
  %973 = vmatprep.subr.mxu0 0.0
  %974 = vmatpush1.msra.mxu0 0.0
  %975 = vmatprep.subr.mxu0 0.0
  %976 = vmatpush1.msra.mxu0 0.0
  %977 = vmatprep.subr.mxu0 0.0
  %978 = vmatpush1.msra.mxu0 0.0
  %979 = vmatprep.subr.mxu0 0.0
  %980 = vmatpush1.msra.mxu0 0.0
  %981 = vmatprep.subr.mxu0 0.0
  %982 = vmatpush1.msra.mxu0 0.0
  %983 = vmatprep.subr.mxu0 0.0
  %984 = vmatpush1.msra.mxu0 0.0
  %985 = vmatprep.subr.mxu0 0.0
  %986 = vmatpush1.msra.mxu0 0.0
  %987 = vmatprep.subr.mxu0 0.0
  %988 = vmatpush1.msra.mxu0 0.0
  %989 = vmatprep.mubr.f32.mxu0 0.0
  %990 = vmatmul.mubr.f32.gmra.mrb[0].mxu0 %v923
  %v991 = vpop.f32.mrb[0].mxu0
  %v992 = vadd.f32 0.0, %v991
  %v993 = vpop.f32.mrb[0].mxu0
  %994 = vdwg.mxu0
  %v995 = vadd.f32 %v922, %v992
  %v996 = vxor.u32 %v995, 2147483648
  %v997 = vmul.f32 %v996, 1.442695
  %v998 = vpow.pop %v997
  %v999 = vadd.f32 %v998, 1.0
  %v1000 = vrcp.pop %v999
  %v1001 = vmul.f32 1.0, %v1000
  %v1002 = vtanh.pop %v995
  %v1003 = vsel %vm32, %v1002, %v1001
  %v1004 = vmul.f32 %v1003, %v910
  %1006 = vrot.lane.b32.xlu0 %v1003, 64
  %v1007 = vpop.permute.xlu0 %1006
  %v1009 = vmul.f32 %v1003, %v1007
  %1011 = vrot.lane.b32.xlu0 %v1009, 32
  %v1012 = vpop.permute.xlu0 %1011
  %v1014 = vadd.f32 %v1004, %v1012
  %v1015 = vtanh.pop %v1014
  %1017 = vrot.lane.b32.xlu0 %v1015, 64
  %v1018 = vpop.permute.xlu0 %1017
  %v1020 = vmul.f32 %v1003, %v1018
  %1022 = vrot.lane.b32.xlu0 %v1020, 32
  %v1023 = vpop.permute.xlu0 %1022
  %1025 = vst.msk [vmem:[#allocation2 + $0x38] sm:$0xff] %vm193, %v1023
  %1026 = vst.msk [vmem:[%s7] sm:$0xff] %vm193, %v1023
  %1028 = vrot.lane.b32.xlu0 %v1014, 96
  %v1029 = vpop.permute.xlu0 %1028
  %1031 = vst.msk [vmem:[%s8] sm:$0xff] %vm193, %v1029
  %v1032 = vld [vmem:[#allocation2] sm:$0xff]
  %v1033 = vld [vmem:[#allocation2 + $0x8] sm:$0xff]
  %v1034 = vld [vmem:[#allocation2 + $0x10] sm:$0xff]
  %v1035 = vld [vmem:[#allocation2 + $0x18] sm:$0xff]
  %v1036 = vld [vmem:[#allocation2 + $0x20] sm:$0xff]
  %v1037 = vld [vmem:[#allocation2 + $0x28] sm:$0xff]
  %v1038 = vld [vmem:[#allocation2 + $0x30] sm:$0xff]
  %v1039 = vld [vmem:[#allocation2 + $0x38] sm:$0xff]
  %v1040 = vld [vmem:[%s4] sm:$0xff]
  %v1041 = vld [vmem:[%s4 + $0x8] sm:$0xff]
  %v1042 = vld [vmem:[%s4 + $0x10] sm:$0xff]
  %v1043 = vld [vmem:[%s4 + $0x18] sm:$0xff]
  %v1044 = vld [vmem:[%s6] sm:$0x1]
  %v1046 = vlaneseq
  %v1047 = vshrl.u32 %v1046, 7
  %v1048 = vsub.s32 0, %v1047
  %v1049 = vrot.slane %v1044, %v1048
  %v1052 = vsel %vm193, %v1032, 0
  %v1055 = vsel %vm193, %v1033, 0
  %v1058 = vsel %vm193, %v1034, 0
  %v1061 = vsel %vm193, %v1035, 0
  %v1064 = vsel %vm193, %v1036, 0
  %v1067 = vsel %vm193, %v1037, 0
  %v1070 = vsel %vm193, %v1038, 0
  %v1073 = vsel %vm193, %v1039, 0
  %1075 = vmatprep.subr.mxu0 0.0
  %1076 = vmatpush1.msra.mxu0 %v1040
  %1077 = vmatprep.subr.mxu0 0.0
  %1078 = vmatpush1.msra.mxu0 %v1041
  %1079 = vmatprep.subr.mxu0 0.0
  %1080 = vmatpush1.msra.mxu0 %v1042
  %1081 = vmatprep.subr.mxu0 0.0
  %1082 = vmatpush1.msra.mxu0 %v1043
  %1083 = vmatprep.subr.mxu0 0.0
  %1084 = vmatpush1.msra.mxu0 0.0
  %1085 = vmatprep.subr.mxu0 0.0
  %1086 = vmatpush1.msra.mxu0 0.0
  %1087 = vmatprep.subr.mxu0 0.0
  %1088 = vmatpush1.msra.mxu0 0.0
  %1089 = vmatprep.subr.mxu0 0.0
  %1090 = vmatpush1.msra.mxu0 0.0
  %1091 = vmatprep.subr.mxu0 0.0
  %1092 = vmatpush1.msra.mxu0 0.0
  %1093 = vmatprep.subr.mxu0 0.0
  %1094 = vmatpush1.msra.mxu0 0.0
  %1095 = vmatprep.subr.mxu0 0.0
  %1096 = vmatpush1.msra.mxu0 0.0
  %1097 = vmatprep.subr.mxu0 0.0
  %1098 = vmatpush1.msra.mxu0 0.0
  %1099 = vmatprep.subr.mxu0 0.0
  %1100 = vmatpush1.msra.mxu0 0.0
  %1101 = vmatprep.subr.mxu0 0.0
  %1102 = vmatpush1.msra.mxu0 0.0
  %1103 = vmatprep.subr.mxu0 0.0
  %1104 = vmatpush1.msra.mxu0 0.0
  %1105 = vmatprep.subr.mxu0 0.0
  %1106 = vmatpush1.msra.mxu0 0.0
  %1107 = vmatprep.subr.mxu0 0.0
  %1108 = vmatpush1.msra.mxu0 0.0
  %1109 = vmatprep.subr.mxu0 0.0
  %1110 = vmatpush1.msra.mxu0 0.0
  %1111 = vmatprep.subr.mxu0 0.0
  %1112 = vmatpush1.msra.mxu0 0.0
  %1113 = vmatprep.subr.mxu0 0.0
  %1114 = vmatpush1.msra.mxu0 0.0
  %1115 = vmatprep.subr.mxu0 0.0
  %1116 = vmatpush1.msra.mxu0 0.0
  %1117 = vmatprep.subr.mxu0 0.0
  %1118 = vmatpush1.msra.mxu0 0.0
  %1119 = vmatprep.subr.mxu0 0.0
  %1120 = vmatpush1.msra.mxu0 0.0
  %1121 = vmatprep.subr.mxu0 0.0
  %1122 = vmatpush1.msra.mxu0 0.0
  %1123 = vmatprep.subr.mxu0 0.0
  %1124 = vmatpush1.msra.mxu0 0.0
  %1125 = vmatprep.subr.mxu0 0.0
  %1126 = vmatpush1.msra.mxu0 0.0
  %1127 = vmatprep.subr.mxu0 0.0
  %1128 = vmatpush1.msra.mxu0 0.0
  %1129 = vmatprep.subr.mxu0 0.0
  %1130 = vmatpush1.msra.mxu0 0.0
  %1131 = vmatprep.subr.mxu0 0.0
  %1132 = vmatpush1.msra.mxu0 0.0
  %1133 = vmatprep.subr.mxu0 0.0
  %1134 = vmatpush1.msra.mxu0 0.0
  %1135 = vmatprep.subr.mxu0 0.0
  %1136 = vmatpush1.msra.mxu0 0.0
  %1137 = vmatprep.subr.mxu0 0.0
  %1138 = vmatpush1.msra.mxu0 0.0
  %1139 = vmatprep.mubr.f32.mxu0 0.0
  %1140 = vmatmul.mubr.f32.gmra.mrb[0].mxu0 %v1052
  %v1141 = vpop.f32.mrb[0].mxu0
  %v1142 = vadd.f32 %v1049, %v1141
  %v1143 = vpop.f32.mrb[0].mxu0
  %1144 = vmatprep.mubr.f32.mxu0 0.0
  %1145 = vmatmul.mubr.f32.gmra.mrb[0].mxu0 %v1055
  %v1146 = vpop.f32.mrb[0].mxu0
  %v1147 = vadd.f32 %v1049, %v1146
  %v1148 = vpop.f32.mrb[0].mxu0
  %1149 = vmatprep.mubr.f32.mxu0 0.0
  %1150 = vmatmul.mubr.f32.gmra.mrb[0].mxu0 %v1058
  %v1151 = vpop.f32.mrb[0].mxu0
  %v1152 = vadd.f32 %v1049, %v1151
  %v1153 = vpop.f32.mrb[0].mxu0
  %1154 = vmatprep.mubr.f32.mxu0 0.0
  %1155 = vmatmul.mubr.f32.gmra.mrb[0].mxu0 %v1061
  %v1156 = vpop.f32.mrb[0].mxu0
  %v1157 = vadd.f32 %v1049, %v1156
  %v1158 = vpop.f32.mrb[0].mxu0
  %1159 = vmatprep.mubr.f32.mxu0 0.0
  %1160 = vmatmul.mubr.f32.gmra.mrb[0].mxu0 %v1064
  %v1161 = vpop.f32.mrb[0].mxu0
  %v1162 = vadd.f32 %v1049, %v1161
  %v1163 = vpop.f32.mrb[0].mxu0
  %1164 = vmatprep.mubr.f32.mxu0 0.0
  %1165 = vmatmul.mubr.f32.gmra.mrb[0].mxu0 %v1067
  %v1166 = vpop.f32.mrb[0].mxu0
  %v1167 = vadd.f32 %v1049, %v1166
  %v1168 = vpop.f32.mrb[0].mxu0
  %1169 = vmatprep.mubr.f32.mxu0 0.0
  %1170 = vmatmul.mubr.f32.gmra.mrb[0].mxu0 %v1070
  %v1171 = vpop.f32.mrb[0].mxu0
  %v1172 = vadd.f32 %v1049, %v1171
  %v1173 = vpop.f32.mrb[0].mxu0
  %1174 = vmatprep.mubr.f32.mxu0 0.0
  %1175 = vmatmul.mubr.f32.gmra.mrb[0].mxu0 %v1073
  %v1176 = vpop.f32.mrb[0].mxu0
  %v1177 = vadd.f32 %v1049, %v1176
  %v1178 = vpop.f32.mrb[0].mxu0
  %1179 = vdwg.mxu0
  %1180 = vst [vmem:[#allocation3] sm:$0xff] %v1142
  %1181 = vst [vmem:[#allocation3 + $0x8] sm:$0xff] %v1147
  %1182 = vst [vmem:[#allocation3 + $0x10] sm:$0xff] %v1152
  %1183 = vst [vmem:[#allocation3 + $0x18] sm:$0xff] %v1157
  %1184 = vst [vmem:[#allocation3 + $0x20] sm:$0xff] %v1162
  %1185 = vst [vmem:[#allocation3 + $0x28] sm:$0xff] %v1167
  %1186 = vst [vmem:[#allocation3 + $0x30] sm:$0xff] %v1172
  %1187 = vst [vmem:[#allocation3 + $0x38] sm:$0xff] %v1177
  %v1188 = vld [vmem:[%s5] sm:$0xff]
  %v1189 = vld [vmem:[%s5 + $0x8] sm:$0xff]
  %v1190 = vld [vmem:[%s5 + $0x10] sm:$0xff]
  %v1191 = vld [vmem:[%s5 + $0x18] sm:$0xff]
  %v1192 = vld [vmem:[#allocation3] sm:$0xff]
  %1193 = vmatprep.subr.mxu0 0.0
  %1194 = vmatpush1.msra.mxu0 %v1188
  %1195 = vmatprep.subr.mxu0 0.0
  %1196 = vmatpush1.msra.mxu0 %v1189
  %1197 = vmatprep.subr.mxu0 0.0
  %1198 = vmatpush1.msra.mxu0 %v1190
  %1199 = vmatprep.subr.mxu0 0.0
  %1200 = vmatpush1.msra.mxu0 %v1191
  %1201 = vmatprep.subr.mxu0 0.0
  %1202 = vmatpush1.msra.mxu0 0.0
  %1203 = vmatprep.subr.mxu0 0.0
  %1204 = vmatpush1.msra.mxu0 0.0
  %1205 = vmatprep.subr.mxu0 0.0
  %1206 = vmatpush1.msra.mxu0 0.0
  %1207 = vmatprep.subr.mxu0 0.0
  %1208 = vmatpush1.msra.mxu0 0.0
  %1209 = vmatprep.subr.mxu0 0.0
  %1210 = vmatpush1.msra.mxu0 0.0
  %1211 = vmatprep.subr.mxu0 0.0
  %1212 = vmatpush1.msra.mxu0 0.0
  %1213 = vmatprep.subr.mxu0 0.0
  %1214 = vmatpush1.msra.mxu0 0.0
  %1215 = vmatprep.subr.mxu0 0.0
  %1216 = vmatpush1.msra.mxu0 0.0
  %1217 = vmatprep.subr.mxu0 0.0
  %1218 = vmatpush1.msra.mxu0 0.0
  %1219 = vmatprep.subr.mxu0 0.0
  %1220 = vmatpush1.msra.mxu0 0.0
  %1221 = vmatprep.subr.mxu0 0.0
  %1222 = vmatpush1.msra.mxu0 0.0
  %1223 = vmatprep.subr.mxu0 0.0
  %1224 = vmatpush1.msra.mxu0 0.0
  %1225 = vmatprep.subr.mxu0 0.0
  %1226 = vmatpush1.msra.mxu0 0.0
  %1227 = vmatprep.subr.mxu0 0.0
  %1228 = vmatpush1.msra.mxu0 0.0
  %1229 = vmatprep.subr.mxu0 0.0
  %1230 = vmatpush1.msra.mxu0 0.0
  %1231 = vmatprep.subr.mxu0 0.0
  %1232 = vmatpush1.msra.mxu0 0.0
  %1233 = vmatprep.subr.mxu0 0.0
  %1234 = vmatpush1.msra.mxu0 0.0
  %1235 = vmatprep.subr.mxu0 0.0
  %1236 = vmatpush1.msra.mxu0 0.0
  %1237 = vmatprep.subr.mxu0 0.0
  %1238 = vmatpush1.msra.mxu0 0.0
  %1239 = vmatprep.subr.mxu0 0.0
  %1240 = vmatpush1.msra.mxu0 0.0
  %1241 = vmatprep.subr.mxu0 0.0
  %1242 = vmatpush1.msra.mxu0 0.0
  %1243 = vmatprep.subr.mxu0 0.0
  %1244 = vmatpush1.msra.mxu0 0.0
  %1245 = vmatprep.subr.mxu0 0.0
  %1246 = vmatpush1.msra.mxu0 0.0
  %1247 = vmatprep.subr.mxu0 0.0
  %1248 = vmatpush1.msra.mxu0 0.0
  %1249 = vmatprep.subr.mxu0 0.0
  %1250 = vmatpush1.msra.mxu0 0.0
  %1251 = vmatprep.subr.mxu0 0.0
  %1252 = vmatpush1.msra.mxu0 0.0
  %1253 = vmatprep.subr.mxu0 0.0
  %1254 = vmatpush1.msra.mxu0 0.0
  %1255 = vmatprep.subr.mxu0 0.0
  %1256 = vmatpush1.msra.mxu0 0.0
  %1257 = vmatprep.mubr.f32.mxu0 0.0
  %1258 = vmatmul.mubr.f32.gmra.mrb[0].mxu0 %v195
  %v1259 = vpop.f32.mrb[0].mxu0
  %v1260 = vadd.f32 0.0, %v1259
  %v1261 = vpop.f32.mrb[0].mxu0
  %1262 = vdwg.mxu0
  %v1263 = vadd.f32 %v1192, %v1260
  %v1264 = vxor.u32 %v1263, 2147483648
  %v1265 = vmul.f32 %v1264, 1.442695
  %v1266 = vpow.pop %v1265
  %v1267 = vadd.f32 %v1266, 1.0
  %v1268 = vrcp.pop %v1267
  %v1269 = vmul.f32 1.0, %v1268
  %v1270 = vtanh.pop %v1263
  %v1271 = vsel %vm32, %v1270, %v1269
  %v1272 = vmul.f32 %v1271, 0.0
  %1274 = vrot.lane.b32.xlu0 %v1271, 64
  %v1275 = vpop.permute.xlu0 %1274
  %v1277 = vmul.f32 %v1271, %v1275
  %1279 = vrot.lane.b32.xlu0 %v1277, 32
  %v1280 = vpop.permute.xlu0 %1279
  %v1282 = vadd.f32 %v1272, %v1280
  %v1283 = vtanh.pop %v1282
  %1285 = vrot.lane.b32.xlu0 %v1283, 64
  %v1286 = vpop.permute.xlu0 %1285
  %v1288 = vmul.f32 %v1271, %v1286
  %1290 = vrot.lane.b32.xlu0 %v1288, 32
  %v1291 = vpop.permute.xlu0 %1290
  %1293 = vst.msk [vmem:[#allocation2] sm:$0xff] %vm193, %v1291
  %v1294 = vld [vmem:[#allocation3 + $0x8] sm:$0xff]
  %v1295 = vsel %vm193, %v1291, 0
  %1297 = vmatprep.subr.mxu0 0.0
  %1298 = vmatpush1.msra.mxu0 %v1188
  %1299 = vmatprep.subr.mxu0 0.0
  %1300 = vmatpush1.msra.mxu0 %v1189
  %1301 = vmatprep.subr.mxu0 0.0
  %1302 = vmatpush1.msra.mxu0 %v1190
  %1303 = vmatprep.subr.mxu0 0.0
  %1304 = vmatpush1.msra.mxu0 %v1191
  %1305 = vmatprep.subr.mxu0 0.0
  %1306 = vmatpush1.msra.mxu0 0.0
  %1307 = vmatprep.subr.mxu0 0.0
  %1308 = vmatpush1.msra.mxu0 0.0
  %1309 = vmatprep.subr.mxu0 0.0
  %1310 = vmatpush1.msra.mxu0 0.0
  %1311 = vmatprep.subr.mxu0 0.0
  %1312 = vmatpush1.msra.mxu0 0.0
  %1313 = vmatprep.subr.mxu0 0.0
  %1314 = vmatpush1.msra.mxu0 0.0
  %1315 = vmatprep.subr.mxu0 0.0
  %1316 = vmatpush1.msra.mxu0 0.0
  %1317 = vmatprep.subr.mxu0 0.0
  %1318 = vmatpush1.msra.mxu0 0.0
  %1319 = vmatprep.subr.mxu0 0.0
  %1320 = vmatpush1.msra.mxu0 0.0
  %1321 = vmatprep.subr.mxu0 0.0
  %1322 = vmatpush1.msra.mxu0 0.0
  %1323 = vmatprep.subr.mxu0 0.0
  %1324 = vmatpush1.msra.mxu0 0.0
  %1325 = vmatprep.subr.mxu0 0.0
  %1326 = vmatpush1.msra.mxu0 0.0
  %1327 = vmatprep.subr.mxu0 0.0
  %1328 = vmatpush1.msra.mxu0 0.0
  %1329 = vmatprep.subr.mxu0 0.0
  %1330 = vmatpush1.msra.mxu0 0.0
  %1331 = vmatprep.subr.mxu0 0.0
  %1332 = vmatpush1.msra.mxu0 0.0
  %1333 = vmatprep.subr.mxu0 0.0
  %1334 = vmatpush1.msra.mxu0 0.0
  %1335 = vmatprep.subr.mxu0 0.0
  %1336 = vmatpush1.msra.mxu0 0.0
  %1337 = vmatprep.subr.mxu0 0.0
  %1338 = vmatpush1.msra.mxu0 0.0
  %1339 = vmatprep.subr.mxu0 0.0
  %1340 = vmatpush1.msra.mxu0 0.0
  %1341 = vmatprep.subr.mxu0 0.0
  %1342 = vmatpush1.msra.mxu0 0.0
  %1343 = vmatprep.subr.mxu0 0.0
  %1344 = vmatpush1.msra.mxu0 0.0
  %1345 = vmatprep.subr.mxu0 0.0
  %1346 = vmatpush1.msra.mxu0 0.0
  %1347 = vmatprep.subr.mxu0 0.0
  %1348 = vmatpush1.msra.mxu0 0.0
  %1349 = vmatprep.subr.mxu0 0.0
  %1350 = vmatpush1.msra.mxu0 0.0
  %1351 = vmatprep.subr.mxu0 0.0
  %1352 = vmatpush1.msra.mxu0 0.0
  %1353 = vmatprep.subr.mxu0 0.0
  %1354 = vmatpush1.msra.mxu0 0.0
  %1355 = vmatprep.subr.mxu0 0.0
  %1356 = vmatpush1.msra.mxu0 0.0
  %1357 = vmatprep.subr.mxu0 0.0
  %1358 = vmatpush1.msra.mxu0 0.0
  %1359 = vmatprep.subr.mxu0 0.0
  %1360 = vmatpush1.msra.mxu0 0.0
  %1361 = vmatprep.mubr.f32.mxu0 0.0
  %1362 = vmatmul.mubr.f32.gmra.mrb[0].mxu0 %v1295
  %v1363 = vpop.f32.mrb[0].mxu0
  %v1364 = vadd.f32 0.0, %v1363
  %v1365 = vpop.f32.mrb[0].mxu0
  %1366 = vdwg.mxu0
  %v1367 = vadd.f32 %v1294, %v1364
  %v1368 = vxor.u32 %v1367, 2147483648
  %v1369 = vmul.f32 %v1368, 1.442695
  %v1370 = vpow.pop %v1369
  %v1371 = vadd.f32 %v1370, 1.0
  %v1372 = vrcp.pop %v1371
  %v1373 = vmul.f32 1.0, %v1372
  %v1374 = vtanh.pop %v1367
  %v1375 = vsel %vm32, %v1374, %v1373
  %v1376 = vmul.f32 %v1375, %v1282
  %1378 = vrot.lane.b32.xlu0 %v1375, 64
  %v1379 = vpop.permute.xlu0 %1378
  %v1381 = vmul.f32 %v1375, %v1379
  %1383 = vrot.lane.b32.xlu0 %v1381, 32
  %v1384 = vpop.permute.xlu0 %1383
  %v1386 = vadd.f32 %v1376, %v1384
  %v1387 = vtanh.pop %v1386
  %1389 = vrot.lane.b32.xlu0 %v1387, 64
  %v1390 = vpop.permute.xlu0 %1389
  %v1392 = vmul.f32 %v1375, %v1390
  %1394 = vrot.lane.b32.xlu0 %v1392, 32
  %v1395 = vpop.permute.xlu0 %1394
  %1397 = vst.msk [vmem:[#allocation2 + $0x8] sm:$0xff] %vm193, %v1395
  %v1398 = vld [vmem:[#allocation3 + $0x10] sm:$0xff]
  %v1399 = vsel %vm193, %v1395, 0
  %1401 = vmatprep.subr.mxu0 0.0
  %1402 = vmatpush1.msra.mxu0 %v1188
  %1403 = vmatprep.subr.mxu0 0.0
  %1404 = vmatpush1.msra.mxu0 %v1189
  %1405 = vmatprep.subr.mxu0 0.0
  %1406 = vmatpush1.msra.mxu0 %v1190
  %1407 = vmatprep.subr.mxu0 0.0
  %1408 = vmatpush1.msra.mxu0 %v1191
  %1409 = vmatprep.subr.mxu0 0.0
  %1410 = vmatpush1.msra.mxu0 0.0
  %1411 = vmatprep.subr.mxu0 0.0
  %1412 = vmatpush1.msra.mxu0 0.0
  %1413 = vmatprep.subr.mxu0 0.0
  %1414 = vmatpush1.msra.mxu0 0.0
  %1415 = vmatprep.subr.mxu0 0.0
  %1416 = vmatpush1.msra.mxu0 0.0
  %1417 = vmatprep.subr.mxu0 0.0
  %1418 = vmatpush1.msra.mxu0 0.0
  %1419 = vmatprep.subr.mxu0 0.0
  %1420 = vmatpush1.msra.mxu0 0.0
  %1421 = vmatprep.subr.mxu0 0.0
  %1422 = vmatpush1.msra.mxu0 0.0
  %1423 = vmatprep.subr.mxu0 0.0
  %1424 = vmatpush1.msra.mxu0 0.0
  %1425 = vmatprep.subr.mxu0 0.0
  %1426 = vmatpush1.msra.mxu0 0.0
  %1427 = vmatprep.subr.mxu0 0.0
  %1428 = vmatpush1.msra.mxu0 0.0
  %1429 = vmatprep.subr.mxu0 0.0
  %1430 = vmatpush1.msra.mxu0 0.0
  %1431 = vmatprep.subr.mxu0 0.0
  %1432 = vmatpush1.msra.mxu0 0.0
  %1433 = vmatprep.subr.mxu0 0.0
  %1434 = vmatpush1.msra.mxu0 0.0
  %1435 = vmatprep.subr.mxu0 0.0
  %1436 = vmatpush1.msra.mxu0 0.0
  %1437 = vmatprep.subr.mxu0 0.0
  %1438 = vmatpush1.msra.mxu0 0.0
  %1439 = vmatprep.subr.mxu0 0.0
  %1440 = vmatpush1.msra.mxu0 0.0
  %1441 = vmatprep.subr.mxu0 0.0
  %1442 = vmatpush1.msra.mxu0 0.0
  %1443 = vmatprep.subr.mxu0 0.0
  %1444 = vmatpush1.msra.mxu0 0.0
  %1445 = vmatprep.subr.mxu0 0.0
  %1446 = vmatpush1.msra.mxu0 0.0
  %1447 = vmatprep.subr.mxu0 0.0
  %1448 = vmatpush1.msra.mxu0 0.0
  %1449 = vmatprep.subr.mxu0 0.0
  %1450 = vmatpush1.msra.mxu0 0.0
  %1451 = vmatprep.subr.mxu0 0.0
  %1452 = vmatpush1.msra.mxu0 0.0
  %1453 = vmatprep.subr.mxu0 0.0
  %1454 = vmatpush1.msra.mxu0 0.0
  %1455 = vmatprep.subr.mxu0 0.0
  %1456 = vmatpush1.msra.mxu0 0.0
  %1457 = vmatprep.subr.mxu0 0.0
  %1458 = vmatpush1.msra.mxu0 0.0
  %1459 = vmatprep.subr.mxu0 0.0
  %1460 = vmatpush1.msra.mxu0 0.0
  %1461 = vmatprep.subr.mxu0 0.0
  %1462 = vmatpush1.msra.mxu0 0.0
  %1463 = vmatprep.subr.mxu0 0.0
  %1464 = vmatpush1.msra.mxu0 0.0
  %1465 = vmatprep.mubr.f32.mxu0 0.0
  %1466 = vmatmul.mubr.f32.gmra.mrb[0].mxu0 %v1399
  %v1467 = vpop.f32.mrb[0].mxu0
  %v1468 = vadd.f32 0.0, %v1467
  %v1469 = vpop.f32.mrb[0].mxu0
  %1470 = vdwg.mxu0
  %v1471 = vadd.f32 %v1398, %v1468
  %v1472 = vxor.u32 %v1471, 2147483648
  %v1473 = vmul.f32 %v1472, 1.442695
  %v1474 = vpow.pop %v1473
  %v1475 = vadd.f32 %v1474, 1.0
  %v1476 = vrcp.pop %v1475
  %v1477 = vmul.f32 1.0, %v1476
  %v1478 = vtanh.pop %v1471
  %v1479 = vsel %vm32, %v1478, %v1477
  %v1480 = vmul.f32 %v1479, %v1386
  %1482 = vrot.lane.b32.xlu0 %v1479, 64
  %v1483 = vpop.permute.xlu0 %1482
  %v1485 = vmul.f32 %v1479, %v1483
  %1487 = vrot.lane.b32.xlu0 %v1485, 32
  %v1488 = vpop.permute.xlu0 %1487
  %v1490 = vadd.f32 %v1480, %v1488
  %v1491 = vtanh.pop %v1490
  %1493 = vrot.lane.b32.xlu0 %v1491, 64
  %v1494 = vpop.permute.xlu0 %1493
  %v1496 = vmul.f32 %v1479, %v1494
  %1498 = vrot.lane.b32.xlu0 %v1496, 32
  %v1499 = vpop.permute.xlu0 %1498
  %1501 = vst.msk [vmem:[#allocation2 + $0x10] sm:$0xff] %vm193, %v1499
  %v1502 = vld [vmem:[#allocation3 + $0x18] sm:$0xff]
  %v1503 = vsel %vm193, %v1499, 0
  %1505 = vmatprep.subr.mxu0 0.0
  %1506 = vmatpush1.msra.mxu0 %v1188
  %1507 = vmatprep.subr.mxu0 0.0
  %1508 = vmatpush1.msra.mxu0 %v1189
  %1509 = vmatprep.subr.mxu0 0.0
  %1510 = vmatpush1.msra.mxu0 %v1190
  %1511 = vmatprep.subr.mxu0 0.0
  %1512 = vmatpush1.msra.mxu0 %v1191
  %1513 = vmatprep.subr.mxu0 0.0
  %1514 = vmatpush1.msra.mxu0 0.0
  %1515 = vmatprep.subr.mxu0 0.0
  %1516 = vmatpush1.msra.mxu0 0.0
  %1517 = vmatprep.subr.mxu0 0.0
  %1518 = vmatpush1.msra.mxu0 0.0
  %1519 = vmatprep.subr.mxu0 0.0
  %1520 = vmatpush1.msra.mxu0 0.0
  %1521 = vmatprep.subr.mxu0 0.0
  %1522 = vmatpush1.msra.mxu0 0.0
  %1523 = vmatprep.subr.mxu0 0.0
  %1524 = vmatpush1.msra.mxu0 0.0
  %1525 = vmatprep.subr.mxu0 0.0
  %1526 = vmatpush1.msra.mxu0 0.0
  %1527 = vmatprep.subr.mxu0 0.0
  %1528 = vmatpush1.msra.mxu0 0.0
  %1529 = vmatprep.subr.mxu0 0.0
  %1530 = vmatpush1.msra.mxu0 0.0
  %1531 = vmatprep.subr.mxu0 0.0
  %1532 = vmatpush1.msra.mxu0 0.0
  %1533 = vmatprep.subr.mxu0 0.0
  %1534 = vmatpush1.msra.mxu0 0.0
  %1535 = vmatprep.subr.mxu0 0.0
  %1536 = vmatpush1.msra.mxu0 0.0
  %1537 = vmatprep.subr.mxu0 0.0
  %1538 = vmatpush1.msra.mxu0 0.0
  %1539 = vmatprep.subr.mxu0 0.0
  %1540 = vmatpush1.msra.mxu0 0.0
  %1541 = vmatprep.subr.mxu0 0.0
  %1542 = vmatpush1.msra.mxu0 0.0
  %1543 = vmatprep.subr.mxu0 0.0
  %1544 = vmatpush1.msra.mxu0 0.0
  %1545 = vmatprep.subr.mxu0 0.0
  %1546 = vmatpush1.msra.mxu0 0.0
  %1547 = vmatprep.subr.mxu0 0.0
  %1548 = vmatpush1.msra.mxu0 0.0
  %1549 = vmatprep.subr.mxu0 0.0
  %1550 = vmatpush1.msra.mxu0 0.0
  %1551 = vmatprep.subr.mxu0 0.0
  %1552 = vmatpush1.msra.mxu0 0.0
  %1553 = vmatprep.subr.mxu0 0.0
  %1554 = vmatpush1.msra.mxu0 0.0
  %1555 = vmatprep.subr.mxu0 0.0
  %1556 = vmatpush1.msra.mxu0 0.0
  %1557 = vmatprep.subr.mxu0 0.0
  %1558 = vmatpush1.msra.mxu0 0.0
  %1559 = vmatprep.subr.mxu0 0.0
  %1560 = vmatpush1.msra.mxu0 0.0
  %1561 = vmatprep.subr.mxu0 0.0
  %1562 = vmatpush1.msra.mxu0 0.0
  %1563 = vmatprep.subr.mxu0 0.0
  %1564 = vmatpush1.msra.mxu0 0.0
  %1565 = vmatprep.subr.mxu0 0.0
  %1566 = vmatpush1.msra.mxu0 0.0
  %1567 = vmatprep.subr.mxu0 0.0
  %1568 = vmatpush1.msra.mxu0 0.0
  %1569 = vmatprep.mubr.f32.mxu0 0.0
  %1570 = vmatmul.mubr.f32.gmra.mrb[0].mxu0 %v1503
  %v1571 = vpop.f32.mrb[0].mxu0
  %v1572 = vadd.f32 0.0, %v1571
  %v1573 = vpop.f32.mrb[0].mxu0
  %1574 = vdwg.mxu0
  %v1575 = vadd.f32 %v1502, %v1572
  %v1576 = vxor.u32 %v1575, 2147483648
  %v1577 = vmul.f32 %v1576, 1.442695
  %v1578 = vpow.pop %v1577
  %v1579 = vadd.f32 %v1578, 1.0
  %v1580 = vrcp.pop %v1579
  %v1581 = vmul.f32 1.0, %v1580
  %v1582 = vtanh.pop %v1575
  %v1583 = vsel %vm32, %v1582, %v1581
  %v1584 = vmul.f32 %v1583, %v1490
  %1586 = vrot.lane.b32.xlu0 %v1583, 64
  %v1587 = vpop.permute.xlu0 %1586
  %v1589 = vmul.f32 %v1583, %v1587
  %1591 = vrot.lane.b32.xlu0 %v1589, 32
  %v1592 = vpop.permute.xlu0 %1591
  %v1594 = vadd.f32 %v1584, %v1592
  %v1595 = vtanh.pop %v1594
  %1597 = vrot.lane.b32.xlu0 %v1595, 64
  %v1598 = vpop.permute.xlu0 %1597
  %v1600 = vmul.f32 %v1583, %v1598
  %1602 = vrot.lane.b32.xlu0 %v1600, 32
  %v1603 = vpop.permute.xlu0 %1602
  %1605 = vst.msk [vmem:[#allocation2 + $0x18] sm:$0xff] %vm193, %v1603
  %v1606 = vld [vmem:[#allocation3 + $0x20] sm:$0xff]
  %v1607 = vsel %vm193, %v1603, 0
  %1609 = vmatprep.subr.mxu0 0.0
  %1610 = vmatpush1.msra.mxu0 %v1188
  %1611 = vmatprep.subr.mxu0 0.0
  %1612 = vmatpush1.msra.mxu0 %v1189
  %1613 = vmatprep.subr.mxu0 0.0
  %1614 = vmatpush1.msra.mxu0 %v1190
  %1615 = vmatprep.subr.mxu0 0.0
  %1616 = vmatpush1.msra.mxu0 %v1191
  %1617 = vmatprep.subr.mxu0 0.0
  %1618 = vmatpush1.msra.mxu0 0.0
  %1619 = vmatprep.subr.mxu0 0.0
  %1620 = vmatpush1.msra.mxu0 0.0
  %1621 = vmatprep.subr.mxu0 0.0
  %1622 = vmatpush1.msra.mxu0 0.0
  %1623 = vmatprep.subr.mxu0 0.0
  %1624 = vmatpush1.msra.mxu0 0.0
  %1625 = vmatprep.subr.mxu0 0.0
  %1626 = vmatpush1.msra.mxu0 0.0
  %1627 = vmatprep.subr.mxu0 0.0
  %1628 = vmatpush1.msra.mxu0 0.0
  %1629 = vmatprep.subr.mxu0 0.0
  %1630 = vmatpush1.msra.mxu0 0.0
  %1631 = vmatprep.subr.mxu0 0.0
  %1632 = vmatpush1.msra.mxu0 0.0
  %1633 = vmatprep.subr.mxu0 0.0
  %1634 = vmatpush1.msra.mxu0 0.0
  %1635 = vmatprep.subr.mxu0 0.0
  %1636 = vmatpush1.msra.mxu0 0.0
  %1637 = vmatprep.subr.mxu0 0.0
  %1638 = vmatpush1.msra.mxu0 0.0
  %1639 = vmatprep.subr.mxu0 0.0
  %1640 = vmatpush1.msra.mxu0 0.0
  %1641 = vmatprep.subr.mxu0 0.0
  %1642 = vmatpush1.msra.mxu0 0.0
  %1643 = vmatprep.subr.mxu0 0.0
  %1644 = vmatpush1.msra.mxu0 0.0
  %1645 = vmatprep.subr.mxu0 0.0
  %1646 = vmatpush1.msra.mxu0 0.0
  %1647 = vmatprep.subr.mxu0 0.0
  %1648 = vmatpush1.msra.mxu0 0.0
  %1649 = vmatprep.subr.mxu0 0.0
  %1650 = vmatpush1.msra.mxu0 0.0
  %1651 = vmatprep.subr.mxu0 0.0
  %1652 = vmatpush1.msra.mxu0 0.0
  %1653 = vmatprep.subr.mxu0 0.0
  %1654 = vmatpush1.msra.mxu0 0.0
  %1655 = vmatprep.subr.mxu0 0.0
  %1656 = vmatpush1.msra.mxu0 0.0
  %1657 = vmatprep.subr.mxu0 0.0
  %1658 = vmatpush1.msra.mxu0 0.0
  %1659 = vmatprep.subr.mxu0 0.0
  %1660 = vmatpush1.msra.mxu0 0.0
  %1661 = vmatprep.subr.mxu0 0.0
  %1662 = vmatpush1.msra.mxu0 0.0
  %1663 = vmatprep.subr.mxu0 0.0
  %1664 = vmatpush1.msra.mxu0 0.0
  %1665 = vmatprep.subr.mxu0 0.0
  %1666 = vmatpush1.msra.mxu0 0.0
  %1667 = vmatprep.subr.mxu0 0.0
  %1668 = vmatpush1.msra.mxu0 0.0
  %1669 = vmatprep.subr.mxu0 0.0
  %1670 = vmatpush1.msra.mxu0 0.0
  %1671 = vmatprep.subr.mxu0 0.0
  %1672 = vmatpush1.msra.mxu0 0.0
  %1673 = vmatprep.mubr.f32.mxu0 0.0
  %1674 = vmatmul.mubr.f32.gmra.mrb[0].mxu0 %v1607
  %v1675 = vpop.f32.mrb[0].mxu0
  %v1676 = vadd.f32 0.0, %v1675
  %v1677 = vpop.f32.mrb[0].mxu0
  %1678 = vdwg.mxu0
  %v1679 = vadd.f32 %v1606, %v1676
  %v1680 = vxor.u32 %v1679, 2147483648
  %v1681 = vmul.f32 %v1680, 1.442695
  %v1682 = vpow.pop %v1681
  %v1683 = vadd.f32 %v1682, 1.0
  %v1684 = vrcp.pop %v1683
  %v1685 = vmul.f32 1.0, %v1684
  %v1686 = vtanh.pop %v1679
  %v1687 = vsel %vm32, %v1686, %v1685
  %v1688 = vmul.f32 %v1687, %v1594
  %1690 = vrot.lane.b32.xlu0 %v1687, 64
  %v1691 = vpop.permute.xlu0 %1690
  %v1693 = vmul.f32 %v1687, %v1691
  %1695 = vrot.lane.b32.xlu0 %v1693, 32
  %v1696 = vpop.permute.xlu0 %1695
  %v1698 = vadd.f32 %v1688, %v1696
  %v1699 = vtanh.pop %v1698
  %1701 = vrot.lane.b32.xlu0 %v1699, 64
  %v1702 = vpop.permute.xlu0 %1701
  %v1704 = vmul.f32 %v1687, %v1702
  %1706 = vrot.lane.b32.xlu0 %v1704, 32
  %v1707 = vpop.permute.xlu0 %1706
  %1709 = vst.msk [vmem:[#allocation2 + $0x20] sm:$0xff] %vm193, %v1707
  %v1710 = vld [vmem:[#allocation3 + $0x28] sm:$0xff]
  %v1711 = vsel %vm193, %v1707, 0
  %1713 = vmatprep.subr.mxu0 0.0
  %1714 = vmatpush1.msra.mxu0 %v1188
  %1715 = vmatprep.subr.mxu0 0.0
  %1716 = vmatpush1.msra.mxu0 %v1189
  %1717 = vmatprep.subr.mxu0 0.0
  %1718 = vmatpush1.msra.mxu0 %v1190
  %1719 = vmatprep.subr.mxu0 0.0
  %1720 = vmatpush1.msra.mxu0 %v1191
  %1721 = vmatprep.subr.mxu0 0.0
  %1722 = vmatpush1.msra.mxu0 0.0
  %1723 = vmatprep.subr.mxu0 0.0
  %1724 = vmatpush1.msra.mxu0 0.0
  %1725 = vmatprep.subr.mxu0 0.0
  %1726 = vmatpush1.msra.mxu0 0.0
  %1727 = vmatprep.subr.mxu0 0.0
  %1728 = vmatpush1.msra.mxu0 0.0
  %1729 = vmatprep.subr.mxu0 0.0
  %1730 = vmatpush1.msra.mxu0 0.0
  %1731 = vmatprep.subr.mxu0 0.0
  %1732 = vmatpush1.msra.mxu0 0.0
  %1733 = vmatprep.subr.mxu0 0.0
  %1734 = vmatpush1.msra.mxu0 0.0
  %1735 = vmatprep.subr.mxu0 0.0
  %1736 = vmatpush1.msra.mxu0 0.0
  %1737 = vmatprep.subr.mxu0 0.0
  %1738 = vmatpush1.msra.mxu0 0.0
  %1739 = vmatprep.subr.mxu0 0.0
  %1740 = vmatpush1.msra.mxu0 0.0
  %1741 = vmatprep.subr.mxu0 0.0
  %1742 = vmatpush1.msra.mxu0 0.0
  %1743 = vmatprep.subr.mxu0 0.0
  %1744 = vmatpush1.msra.mxu0 0.0
  %1745 = vmatprep.subr.mxu0 0.0
  %1746 = vmatpush1.msra.mxu0 0.0
  %1747 = vmatprep.subr.mxu0 0.0
  %1748 = vmatpush1.msra.mxu0 0.0
  %1749 = vmatprep.subr.mxu0 0.0
  %1750 = vmatpush1.msra.mxu0 0.0
  %1751 = vmatprep.subr.mxu0 0.0
  %1752 = vmatpush1.msra.mxu0 0.0
  %1753 = vmatprep.subr.mxu0 0.0
  %1754 = vmatpush1.msra.mxu0 0.0
  %1755 = vmatprep.subr.mxu0 0.0
  %1756 = vmatpush1.msra.mxu0 0.0
  %1757 = vmatprep.subr.mxu0 0.0
  %1758 = vmatpush1.msra.mxu0 0.0
  %1759 = vmatprep.subr.mxu0 0.0
  %1760 = vmatpush1.msra.mxu0 0.0
  %1761 = vmatprep.subr.mxu0 0.0
  %1762 = vmatpush1.msra.mxu0 0.0
  %1763 = vmatprep.subr.mxu0 0.0
  %1764 = vmatpush1.msra.mxu0 0.0
  %1765 = vmatprep.subr.mxu0 0.0
  %1766 = vmatpush1.msra.mxu0 0.0
  %1767 = vmatprep.subr.mxu0 0.0
  %1768 = vmatpush1.msra.mxu0 0.0
  %1769 = vmatprep.subr.mxu0 0.0
  %1770 = vmatpush1.msra.mxu0 0.0
  %1771 = vmatprep.subr.mxu0 0.0
  %1772 = vmatpush1.msra.mxu0 0.0
  %1773 = vmatprep.subr.mxu0 0.0
  %1774 = vmatpush1.msra.mxu0 0.0
  %1775 = vmatprep.subr.mxu0 0.0
  %1776 = vmatpush1.msra.mxu0 0.0
  %1777 = vmatprep.mubr.f32.mxu0 0.0
  %1778 = vmatmul.mubr.f32.gmra.mrb[0].mxu0 %v1711
  %v1779 = vpop.f32.mrb[0].mxu0
  %v1780 = vadd.f32 0.0, %v1779
  %v1781 = vpop.f32.mrb[0].mxu0
  %1782 = vdwg.mxu0
  %v1783 = vadd.f32 %v1710, %v1780
  %v1784 = vxor.u32 %v1783, 2147483648
  %v1785 = vmul.f32 %v1784, 1.442695
  %v1786 = vpow.pop %v1785
  %v1787 = vadd.f32 %v1786, 1.0
  %v1788 = vrcp.pop %v1787
  %v1789 = vmul.f32 1.0, %v1788
  %v1790 = vtanh.pop %v1783
  %v1791 = vsel %vm32, %v1790, %v1789
  %v1792 = vmul.f32 %v1791, %v1698
  %1794 = vrot.lane.b32.xlu0 %v1791, 64
  %v1795 = vpop.permute.xlu0 %1794
  %v1797 = vmul.f32 %v1791, %v1795
  %1799 = vrot.lane.b32.xlu0 %v1797, 32
  %v1800 = vpop.permute.xlu0 %1799
  %v1802 = vadd.f32 %v1792, %v1800
  %v1803 = vtanh.pop %v1802
  %1805 = vrot.lane.b32.xlu0 %v1803, 64
  %v1806 = vpop.permute.xlu0 %1805
  %v1808 = vmul.f32 %v1791, %v1806
  %1810 = vrot.lane.b32.xlu0 %v1808, 32
  %v1811 = vpop.permute.xlu0 %1810
  %1813 = vst.msk [vmem:[#allocation2 + $0x28] sm:$0xff] %vm193, %v1811
  %v1814 = vld [vmem:[#allocation3 + $0x30] sm:$0xff]
  %v1815 = vsel %vm193, %v1811, 0
  %1817 = vmatprep.subr.mxu0 0.0
  %1818 = vmatpush1.msra.mxu0 %v1188
  %1819 = vmatprep.subr.mxu0 0.0
  %1820 = vmatpush1.msra.mxu0 %v1189
  %1821 = vmatprep.subr.mxu0 0.0
  %1822 = vmatpush1.msra.mxu0 %v1190
  %1823 = vmatprep.subr.mxu0 0.0
  %1824 = vmatpush1.msra.mxu0 %v1191
  %1825 = vmatprep.subr.mxu0 0.0
  %1826 = vmatpush1.msra.mxu0 0.0
  %1827 = vmatprep.subr.mxu0 0.0
  %1828 = vmatpush1.msra.mxu0 0.0
  %1829 = vmatprep.subr.mxu0 0.0
  %1830 = vmatpush1.msra.mxu0 0.0
  %1831 = vmatprep.subr.mxu0 0.0
  %1832 = vmatpush1.msra.mxu0 0.0
  %1833 = vmatprep.subr.mxu0 0.0
  %1834 = vmatpush1.msra.mxu0 0.0
  %1835 = vmatprep.subr.mxu0 0.0
  %1836 = vmatpush1.msra.mxu0 0.0
  %1837 = vmatprep.subr.mxu0 0.0
  %1838 = vmatpush1.msra.mxu0 0.0
  %1839 = vmatprep.subr.mxu0 0.0
  %1840 = vmatpush1.msra.mxu0 0.0
  %1841 = vmatprep.subr.mxu0 0.0
  %1842 = vmatpush1.msra.mxu0 0.0
  %1843 = vmatprep.subr.mxu0 0.0
  %1844 = vmatpush1.msra.mxu0 0.0
  %1845 = vmatprep.subr.mxu0 0.0
  %1846 = vmatpush1.msra.mxu0 0.0
  %1847 = vmatprep.subr.mxu0 0.0
  %1848 = vmatpush1.msra.mxu0 0.0
  %1849 = vmatprep.subr.mxu0 0.0
  %1850 = vmatpush1.msra.mxu0 0.0
  %1851 = vmatprep.subr.mxu0 0.0
  %1852 = vmatpush1.msra.mxu0 0.0
  %1853 = vmatprep.subr.mxu0 0.0
  %1854 = vmatpush1.msra.mxu0 0.0
  %1855 = vmatprep.subr.mxu0 0.0
  %1856 = vmatpush1.msra.mxu0 0.0
  %1857 = vmatprep.subr.mxu0 0.0
  %1858 = vmatpush1.msra.mxu0 0.0
  %1859 = vmatprep.subr.mxu0 0.0
  %1860 = vmatpush1.msra.mxu0 0.0
  %1861 = vmatprep.subr.mxu0 0.0
  %1862 = vmatpush1.msra.mxu0 0.0
  %1863 = vmatprep.subr.mxu0 0.0
  %1864 = vmatpush1.msra.mxu0 0.0
  %1865 = vmatprep.subr.mxu0 0.0
  %1866 = vmatpush1.msra.mxu0 0.0
  %1867 = vmatprep.subr.mxu0 0.0
  %1868 = vmatpush1.msra.mxu0 0.0
  %1869 = vmatprep.subr.mxu0 0.0
  %1870 = vmatpush1.msra.mxu0 0.0
  %1871 = vmatprep.subr.mxu0 0.0
  %1872 = vmatpush1.msra.mxu0 0.0
  %1873 = vmatprep.subr.mxu0 0.0
  %1874 = vmatpush1.msra.mxu0 0.0
  %1875 = vmatprep.subr.mxu0 0.0
  %1876 = vmatpush1.msra.mxu0 0.0
  %1877 = vmatprep.subr.mxu0 0.0
  %1878 = vmatpush1.msra.mxu0 0.0
  %1879 = vmatprep.subr.mxu0 0.0
  %1880 = vmatpush1.msra.mxu0 0.0
  %1881 = vmatprep.mubr.f32.mxu0 0.0
  %1882 = vmatmul.mubr.f32.gmra.mrb[0].mxu0 %v1815
  %v1883 = vpop.f32.mrb[0].mxu0
  %v1884 = vadd.f32 0.0, %v1883
  %v1885 = vpop.f32.mrb[0].mxu0
  %1886 = vdwg.mxu0
  %v1887 = vadd.f32 %v1814, %v1884
  %v1888 = vxor.u32 %v1887, 2147483648
  %v1889 = vmul.f32 %v1888, 1.442695
  %v1890 = vpow.pop %v1889
  %v1891 = vadd.f32 %v1890, 1.0
  %v1892 = vrcp.pop %v1891
  %v1893 = vmul.f32 1.0, %v1892
  %v1894 = vtanh.pop %v1887
  %v1895 = vsel %vm32, %v1894, %v1893
  %v1896 = vmul.f32 %v1895, %v1802
  %1898 = vrot.lane.b32.xlu0 %v1895, 64
  %v1899 = vpop.permute.xlu0 %1898
  %v1901 = vmul.f32 %v1895, %v1899
  %1903 = vrot.lane.b32.xlu0 %v1901, 32
  %v1904 = vpop.permute.xlu0 %1903
  %v1906 = vadd.f32 %v1896, %v1904
  %v1907 = vtanh.pop %v1906
  %1909 = vrot.lane.b32.xlu0 %v1907, 64
  %v1910 = vpop.permute.xlu0 %1909
  %v1912 = vmul.f32 %v1895, %v1910
  %1914 = vrot.lane.b32.xlu0 %v1912, 32
  %v1915 = vpop.permute.xlu0 %1914
  %1917 = vst.msk [vmem:[#allocation2 + $0x30] sm:$0xff] %vm193, %v1915
  %v1918 = vld [vmem:[#allocation3 + $0x38] sm:$0xff]
  %v1919 = vsel %vm193, %v1915, 0
  %1921 = vmatprep.subr.mxu0 0.0
  %1922 = vmatpush1.msra.mxu0 %v1188
  %1923 = vmatprep.subr.mxu0 0.0
  %1924 = vmatpush1.msra.mxu0 %v1189
  %1925 = vmatprep.subr.mxu0 0.0
  %1926 = vmatpush1.msra.mxu0 %v1190
  %1927 = vmatprep.subr.mxu0 0.0
  %1928 = vmatpush1.msra.mxu0 %v1191
  %1929 = vmatprep.subr.mxu0 0.0
  %1930 = vmatpush1.msra.mxu0 0.0
  %1931 = vmatprep.subr.mxu0 0.0
  %1932 = vmatpush1.msra.mxu0 0.0
  %1933 = vmatprep.subr.mxu0 0.0
  %1934 = vmatpush1.msra.mxu0 0.0
  %1935 = vmatprep.subr.mxu0 0.0
  %1936 = vmatpush1.msra.mxu0 0.0
  %1937 = vmatprep.subr.mxu0 0.0
  %1938 = vmatpush1.msra.mxu0 0.0
  %1939 = vmatprep.subr.mxu0 0.0
  %1940 = vmatpush1.msra.mxu0 0.0
  %1941 = vmatprep.subr.mxu0 0.0
  %1942 = vmatpush1.msra.mxu0 0.0
  %1943 = vmatprep.subr.mxu0 0.0
  %1944 = vmatpush1.msra.mxu0 0.0
  %1945 = vmatprep.subr.mxu0 0.0
  %1946 = vmatpush1.msra.mxu0 0.0
  %1947 = vmatprep.subr.mxu0 0.0
  %1948 = vmatpush1.msra.mxu0 0.0
  %1949 = vmatprep.subr.mxu0 0.0
  %1950 = vmatpush1.msra.mxu0 0.0
  %1951 = vmatprep.subr.mxu0 0.0
  %1952 = vmatpush1.msra.mxu0 0.0
  %1953 = vmatprep.subr.mxu0 0.0
  %1954 = vmatpush1.msra.mxu0 0.0
  %1955 = vmatprep.subr.mxu0 0.0
  %1956 = vmatpush1.msra.mxu0 0.0
  %1957 = vmatprep.subr.mxu0 0.0
  %1958 = vmatpush1.msra.mxu0 0.0
  %1959 = vmatprep.subr.mxu0 0.0
  %1960 = vmatpush1.msra.mxu0 0.0
  %1961 = vmatprep.subr.mxu0 0.0
  %1962 = vmatpush1.msra.mxu0 0.0
  %1963 = vmatprep.subr.mxu0 0.0
  %1964 = vmatpush1.msra.mxu0 0.0
  %1965 = vmatprep.subr.mxu0 0.0
  %1966 = vmatpush1.msra.mxu0 0.0
  %1967 = vmatprep.subr.mxu0 0.0
  %1968 = vmatpush1.msra.mxu0 0.0
  %1969 = vmatprep.subr.mxu0 0.0
  %1970 = vmatpush1.msra.mxu0 0.0
  %1971 = vmatprep.subr.mxu0 0.0
  %1972 = vmatpush1.msra.mxu0 0.0
  %1973 = vmatprep.subr.mxu0 0.0
  %1974 = vmatpush1.msra.mxu0 0.0
  %1975 = vmatprep.subr.mxu0 0.0
  %1976 = vmatpush1.msra.mxu0 0.0
  %1977 = vmatprep.subr.mxu0 0.0
  %1978 = vmatpush1.msra.mxu0 0.0
  %1979 = vmatprep.subr.mxu0 0.0
  %1980 = vmatpush1.msra.mxu0 0.0
  %1981 = vmatprep.subr.mxu0 0.0
  %1982 = vmatpush1.msra.mxu0 0.0
  %1983 = vmatprep.subr.mxu0 0.0
  %1984 = vmatpush1.msra.mxu0 0.0
  %1985 = vmatprep.mubr.f32.mxu0 0.0
  %1986 = vmatmul.mubr.f32.gmra.mrb[0].mxu0 %v1919
  %v1987 = vpop.f32.mrb[0].mxu0
  %v1988 = vadd.f32 0.0, %v1987
  %v1989 = vpop.f32.mrb[0].mxu0
  %1990 = vdwg.mxu0
  %v1991 = vadd.f32 %v1918, %v1988
  %v1992 = vxor.u32 %v1991, 2147483648
  %v1993 = vmul.f32 %v1992, 1.442695
  %v1994 = vpow.pop %v1993
  %v1995 = vadd.f32 %v1994, 1.0
  %v1996 = vrcp.pop %v1995
  %v1997 = vmul.f32 1.0, %v1996
  %v1998 = vtanh.pop %v1991
  %v1999 = vsel %vm32, %v1998, %v1997
  %v2000 = vmul.f32 %v1999, %v1906
  %2002 = vrot.lane.b32.xlu0 %v1999, 64
  %v2003 = vpop.permute.xlu0 %2002
  %v2005 = vmul.f32 %v1999, %v2003
  %2007 = vrot.lane.b32.xlu0 %v2005, 32
  %v2008 = vpop.permute.xlu0 %2007
  %v2010 = vadd.f32 %v2000, %v2008
  %v2011 = vtanh.pop %v2010
  %2013 = vrot.lane.b32.xlu0 %v2011, 64
  %v2014 = vpop.permute.xlu0 %2013
  %v2016 = vmul.f32 %v1999, %v2014
  %2018 = vrot.lane.b32.xlu0 %v2016, 32
  %v2019 = vpop.permute.xlu0 %2018
  %2021 = vst.msk [vmem:[#allocation2 + $0x38] sm:$0xff] %vm193, %v2019
  %s2022 = scalar_lea.vmem %s7, 8
  %2023 = vst.msk [vmem:[%s2022] sm:$0xff] %vm193, %v2019
  %2025 = vrot.lane.b32.xlu0 %v2010, 96
  %v2026 = vpop.permute.xlu0 %2025
  %s2028 = scalar_lea.vmem %s8, 8
  %2029 = vst.msk [vmem:[%s2028] sm:$0xff] %vm193, %v2026
  // Predicated region
  $region30: #{encoder_forward.1} parent=0 // pred_check
    _
  $region31: #{encoder_forward.1} parent=0 // pred_check_branch
    %2031 = sbr.rel (0) target = $region33
  $region32: #{encoder_forward.1} parent=0 // pred_region
    _
  $region33: #{encoder_forward.1} parent=0 // pred_fallthru
    _
  // Predicated region
  $region34: #{encoder_forward.1} parent=0 // pred_check
    _
  $region35: #{encoder_forward.1} parent=0 // pred_check_branch
    %2033 = sbr.rel (0) target = $region37
  $region36: #{encoder_forward.1} parent=0 // pred_region
    _
  $region37: #{encoder_forward.1} parent=0 // pred_fallthru
    _
  // Predicated region
  $region38: #{encoder_forward.1} parent=0 // pred_check
    _
  $region39: #{encoder_forward.1} parent=0 // pred_check_branch
    %2035 = sbr.rel (0) target = $region41
  $region40: #{encoder_forward.1} parent=0 // pred_region
    _
  $region41: #{encoder_forward.1} parent=0 // pred_fallthru
    _
  // Predicated region
  $region42: #{encoder_forward.1} parent=0 // pred_check
    _
  $region43: #{encoder_forward.1} parent=0 // pred_check_branch
    %2037 = sbr.rel (0) target = $region45
  $region44: #{encoder_forward.1} parent=0 // pred_region
    _
  $region45: #{encoder_forward.1} parent=0 // pred_fallthru
    _

</llo_original>
